<compile_context>
chip_gen: v6e
topology: v6e:2x2x1
jax: 0.10.0
libtpu: 0.0.40
codegen_flags: <defaults>
</compile_context>

<pallas_src>
import math
import functools

import jax
import jax.numpy as jnp
from jax.experimental import pallas as pl
from jax.experimental.pallas import tpu as pltpu


def _sa_fused_kernel(x_ref, m_ref, wv_ref, bv_ref, wt_ref, bt_ref,
                     gamma_ref, beta_ref, o_ref,
                     t_scr, scale_scr, shift_scr,
                     *, eps, inv_count, compute_dtype):
    phase = pl.program_id(0)
    b = pl.program_id(1)

    @pl.when(phase == 0)
    def _compute():
        x = x_ref[0]                                    # [C, N] f32, N on lanes
        xc = x.astype(compute_dtype)

        # y = (Wq^T Wq / sqrt(da)) @ x  -> lane-dense [C, N]
        y = jnp.dot(m_ref[...], xc, preferred_element_type=jnp.float32)
        # energy[n, m] = sum_c x[c, n] * y[c, m]  (no explicit x^T, no [N, C] tile)
        energy = jax.lax.dot_general(
            xc, y.astype(compute_dtype),
            dimension_numbers=(((0,), (0,)), ((), ())),
            preferred_element_type=jnp.float32)         # [N, N]

        # Row softmax in f32; exact division (approx reciprocal's ~2^-12 error gets
        # amplified by BatchNorm's 1/std downstream).
        emax = jnp.max(energy, axis=-1, keepdims=True)
        p = jnp.exp(energy - emax)
        attn = p / jnp.sum(p, axis=-1, keepdims=True)   # [N, N]

        # v_conv, attention-weighted sum (torch: x_s = bmm(x_v, attention)), trans_conv
        v = jnp.dot(wv_ref[...], xc,
                    preferred_element_type=jnp.float32) + bv_ref[...]            # [C, N]
        xs = jnp.dot(v.astype(compute_dtype), attn.astype(compute_dtype),
                     preferred_element_type=jnp.float32)                          # [C, N]
        t = jnp.dot(wt_ref[...], xs.astype(compute_dtype),
                    preferred_element_type=jnp.float32) + bt_ref[...]             # [C, N]

        # Pre-BN activations stay resident in VMEM — never round-trip through HBM.
        t_scr[b] = t

    @pl.when(phase == 1)
    def _epilogue():
        @pl.when(b == 0)
        def _stats():
            # Exact batch statistics (centered, biased variance) over the VMEM stash.
            nb, ch, _ = t_scr.shape
            s = jnp.zeros((ch, 1), jnp.float32)
            for i in range(nb):                          # static unroll; cheap VPU work
                s = s + jnp.sum(t_scr[i], axis=-1, keepdims=True)
            mean = s * inv_count                         # [C, 1]
            sq = jnp.zeros((ch, 1), jnp.float32)
            for i in range(nb):
                d = t_scr[i] - mean
                sq = sq + jnp.sum(d * d, axis=-1, keepdims=True)
            var = sq * inv_count
            inv_std = jax.lax.rsqrt(var + eps)
            scale_scr[...] = gamma_ref[...] * inv_std
            shift_scr[...] = beta_ref[...] - mean * gamma_ref[...] * inv_std

        # BN + ReLU + residual; (1, C, N) output block -> writeback pipelines per batch.
        t = t_scr[b]
        o_ref[0] = x_ref[0] + jnp.maximum(t * scale_scr[...] + shift_scr[...], 0.0)


def sa_forward(x_bcn, params, *, compute_dtype=jnp.bfloat16):
    """Fused SA forward. x_bcn: [B, C, N] float32 (native Conv1d layout) -> [B, C, N].

    compute_dtype affects only the matmul operands (accumulation, softmax and the
    BatchNorm math stay float32). bfloat16 is the MXU-native default; pass jnp.float32
    to reproduce torch float32 numerics.
    """
    wq, wv, bv, wt, bt, gamma, beta = params
    B, C, N = x_bcn.shape
    da = wq.shape[0]
    hp = jax.lax.Precision.HIGHEST

    # Shared q/k weight fused host-side: M = Wq^T Wq / sqrt(da) (HIGHEST precision —
    # the default TPU f32 dot is bf16 passes, which is what broke the 2e-3 check).
    m = (jnp.dot(wq.T, wq, precision=hp) / math.sqrt(da)).astype(compute_dtype)
    wv_c = wv.astype(compute_dtype)
    wt_c = wt.astype(compute_dtype)
    bv2 = bv.reshape(C, 1).astype(jnp.float32)
    bt2 = bt.reshape(C, 1).astype(jnp.float32)
    g2 = gamma.reshape(C, 1).astype(jnp.float32)
    be2 = beta.reshape(C, 1).astype(jnp.float32)
    x_f = x_bcn.astype(jnp.float32)

    # VMEM budget: t stash + double-buffered per-batch x/out blocks + weights + NxN
    # softmax working set; capped at 48 MiB for headroom under v7x's 64 MiB physical.
    w_item = jnp.dtype(compute_dtype).itemsize
    est = (4 * B * C * N                 # t_scr (f32)
           + 4 * 4 * C * N               # x + out blocks, double-buffered, f32
           + 3 * 2 * C * C * w_item      # M, Wv, Wt (double-buffered)
           + 8 * 4 * N * N               # energy / softmax working set
           + (4 << 20))                  # compiler-internal scratch headroom
    vmem_limit = int(min(48 * 1024 * 1024, max(2 * est, 32 * 1024 * 1024)))

    cost = pl.CostEstimate(
        flops=int(B * (6 * N * C * C + 4 * N * N * C)),
        transcendentals=int(B * N * N),
        bytes_accessed=int(4 * (3 * B * C * N + 3 * C * C + 4 * C)),
    )

    kern = functools.partial(
        _sa_fused_kernel,
        eps=1e-5,
        inv_count=1.0 / float(B * N),
        compute_dtype=compute_dtype,
    )

    return pl.pallas_call(
        kern,
        out_shape=jax.ShapeDtypeStruct((B, C, N), jnp.float32),
        grid=(2, B),                                           # (phase, batch)
        in_specs=[
            pl.BlockSpec((1, C, N), lambda p, b: (b, 0, 0)),   # x: pipelined per batch
            pl.BlockSpec((C, C), lambda p, b: (0, 0)),         # M = Wq^T Wq / sqrt(da)
            pl.BlockSpec((C, C), lambda p, b: (0, 0)),         # Wv
            pl.BlockSpec((C, 1), lambda p, b: (0, 0)),         # bv
            pl.BlockSpec((C, C), lambda p, b: (0, 0)),         # Wt
            pl.BlockSpec((C, 1), lambda p, b: (0, 0)),         # bt
            pl.BlockSpec((C, 1), lambda p, b: (0, 0)),         # gamma
            pl.BlockSpec((C, 1), lambda p, b: (0, 0)),         # beta
        ],
        # Phase 0 never writes the output; park its block index at 0 so every output
        # block is DMA'd to HBM exactly once, right after phase 1 produces it.
        out_specs=pl.BlockSpec((1, C, N), lambda p, b: (b * p, 0, 0)),
        scratch_shapes=[
            pltpu.VMEM((B, C, N), jnp.float32),   # pre-BN t (never hits HBM)
            pltpu.VMEM((C, 1), jnp.float32),      # BN scale = gamma / std
            pltpu.VMEM((C, 1), jnp.float32),      # BN shift = beta - mean*gamma/std
        ],
        compiler_params=pltpu.CompilerParams(
            # Sequential: phase 1 consumes the full-batch stash; BN stats are global.
            dimension_semantics=("arbitrary", "arbitrary"),
            vmem_limit_bytes=vmem_limit,
        ),
        cost_estimate=cost,
    )(x_f, m, wv_c, bv2, wt_c, bt2, g2, be2)


def sa_reference(x_bcn, params):
    """Pure-JAX reference mirroring the PyTorch training-mode forward (full f32)."""
    wq, wv, bv, wt, bt, gamma, beta = params
    da = wq.shape[0]
    hp = jax.lax.Precision.HIGHEST
    x_q = jnp.einsum("dc,bcn->bnd", wq, x_bcn, precision=hp)
    x_k = jnp.einsum("dc,bcn->bdn", wq, x_bcn, precision=hp)     # shared q/k weight
    x_v = jnp.einsum("oc,bcn->bon", wv, x_bcn, precision=hp) + bv[None, :, None]
    energy = jnp.einsum("bnd,bdm->bnm", x_q, x_k, precision=hp) / math.sqrt(da)
    attention = jax.nn.softmax(energy, axis=-1)
    x_s = jnp.einsum("bcn,bnm->bcm", x_v, attention, precision=hp)
    t = jnp.einsum("oc,bcn->bon", wt, x_s, precision=hp) + bt[None, :, None]
    mean = jnp.mean(t, axis=(0, 2), keepdims=True)
    var = jnp.mean(jnp.square(t - mean), axis=(0, 2), keepdims=True)
    t_hat = (t - mean) * jax.lax.rsqrt(var + 1e-5)
    y = jnp.maximum(t_hat * gamma[None, :, None] + beta[None, :, None], 0.0)
    return x_bcn + y


def init_params(key, channels):
    da = channels // 4
    k1, k2, k3, k4, k5, k6, k7 = jax.random.split(key, 7)
    wq = 0.25 * jax.random.normal(k1, (da, channels), jnp.float32)      # shared q/k
    wv = 0.3 * jax.random.normal(k2, (channels, channels), jnp.float32)
    bv = 0.1 * jax.random.normal(k3, (channels,), jnp.float32)
    wt = 0.3 * jax.random.normal(k4, (channels, channels), jnp.float32)
    bt = 0.1 * jax.random.normal(k5, (channels,), jnp.float32)
    gamma = 1.0 + 0.1 * jax.random.normal(k6, (channels,), jnp.float32)
    beta = 0.1 * jax.random.normal(k7, (channels,), jnp.float32)
    return (wq, wv, bv, wt, bt, gamma, beta)


if __name__ == "__main__":
    B, C, N = 2, 32, 128   # x: [B, de, N]; N=128 keeps the lane dim dense
    key = jax.random.PRNGKey(0)
    kx, kp = jax.random.split(key)
    x = jax.random.normal(kx, (B, C, N), jnp.float32)
    params = init_params(kp, C)

    ref = jax.block_until_ready(sa_reference(x, params))

    # Strict functional check: f32 matmul operands (torch float32 numerics).
    out_f32 = jax.block_until_ready(sa_forward(x, params, compute_dtype=jnp.float32))
    assert out_f32.shape == (B, C, N)
    err_f32 = float(jnp.max(jnp.abs(out_f32 - ref)))
    assert jnp.allclose(out_f32, ref, atol=2e-3, rtol=2e-3), err_f32

    # Default bf16-operand path (MXU rate on v5e/v6e/v7x): coarse sanity only —
    # BatchNorm's 1/std amplifies operand rounding, so 2e-3 is not expected here.
    out_bf16 = jax.block_until_ready(sa_forward(x, params))
    assert bool(jnp.isfinite(out_bf16).all())
    err_bf16 = float(jnp.max(jnp.abs(out_bf16 - ref)))
    assert err_bf16 < 0.5, err_bf16

    print("KERNEL_OK")
</pallas_src>

<mosaic_0001>
module attributes {stable_mosaic.version = 11 : i64} {
  func.func @_sa_fused_kernel(%arg0: i32, %arg1: i32, %arg2: memref<1x32x128xf32, #tpu.memory_space<vmem>>, %arg3: memref<32x32xf32, #tpu.memory_space<vmem>>, %arg4: memref<32x32xf32, #tpu.memory_space<vmem>>, %arg5: memref<32x1xf32, #tpu.memory_space<vmem>>, %arg6: memref<32x32xf32, #tpu.memory_space<vmem>>, %arg7: memref<32x1xf32, #tpu.memory_space<vmem>>, %arg8: memref<32x1xf32, #tpu.memory_space<vmem>>, %arg9: memref<32x1xf32, #tpu.memory_space<vmem>>, %arg10: memref<1x32x128xf32, #tpu.memory_space<vmem>>, %arg11: memref<2x32x128xf32, #tpu.memory_space<vmem>>, %arg12: memref<32x1xf32, #tpu.memory_space<vmem>>, %arg13: memref<32x1xf32, #tpu.memory_space<vmem>>) attributes {dimension_semantics = [#tpu.dimension_semantics<arbitrary>, #tpu.dimension_semantics<arbitrary>], iteration_bounds = array<i64: 2, 2>, scalar_prefetch = 0 : i64, scratch_operands = 3 : i64, tpu.core_type = #tpu.core_type<tc>, window_params = [{transform_indices = @transform_0, window_bounds = array<i64: 1, 32, 128>}, {pipeline_mode = #tpu.pipeline_mode<synchronous>, transform_indices = @transform_1, window_bounds = array<i64: 32, 32>}, {pipeline_mode = #tpu.pipeline_mode<synchronous>, transform_indices = @transform_2, window_bounds = array<i64: 32, 32>}, {pipeline_mode = #tpu.pipeline_mode<synchronous>, transform_indices = @transform_3, window_bounds = array<i64: 32, 1>}, {pipeline_mode = #tpu.pipeline_mode<synchronous>, transform_indices = @transform_4, window_bounds = array<i64: 32, 32>}, {pipeline_mode = #tpu.pipeline_mode<synchronous>, transform_indices = @transform_5, window_bounds = array<i64: 32, 1>}, {pipeline_mode = #tpu.pipeline_mode<synchronous>, transform_indices = @transform_6, window_bounds = array<i64: 32, 1>}, {pipeline_mode = #tpu.pipeline_mode<synchronous>, transform_indices = @transform_7, window_bounds = array<i64: 32, 1>}, {transform_indices = @transform_8, window_bounds = array<i64: 1, 32, 128>}]} {
    %c0_i32 = arith.constant 0 : i32
    %0 = arith.cmpi eq, %arg0, %c0_i32 : i32
    %1 = arith.extui %0 : i1 to i32
    %c0_i32_0 = arith.constant 0 : i32
    %2 = arith.cmpi ne, %1, %c0_i32_0 : i32
    scf.if %2 {
      %c0 = arith.constant 0 : index
      %c0_2 = arith.constant 0 : index
      %c0_3 = arith.constant 0 : index
      %6 = vector.load %arg2[%c0, %c0_2, %c0_3] : memref<1x32x128xf32, #tpu.memory_space<vmem>>, vector<1x32x128xf32>
      %7 = vector.shape_cast %6 : vector<1x32x128xf32> to vector<32x128xf32>
      %c0_4 = arith.constant 0 : index
      %c0_5 = arith.constant 0 : index
      %8 = vector.load %arg3[%c0_4, %c0_5] : memref<32x32xf32, #tpu.memory_space<vmem>>, vector<32x32xf32>
      %cst = arith.constant dense<0.000000e+00> : vector<32x128xf32>
      %9 = tpu.matmul %8, %7, %cst {dimension_numbers = #tpu.dot_dimension_numbers<[1], [0], [0], [1], [0, 0, 1, 1], [], []>} : vector<32x32xf32>, vector<32x128xf32>, vector<32x128xf32> -> vector<32x128xf32>
      %cst_6 = arith.constant dense<0.000000e+00> : vector<128x128xf32>
      %10 = tpu.matmul %7, %9, %cst_6 {dimension_numbers = #tpu.dot_dimension_numbers<[0], [0], [1], [1], [0, 1, 1, 1], [], []>} : vector<32x128xf32>, vector<32x128xf32>, vector<128x128xf32> -> vector<128x128xf32>
      %cst_7 = arith.constant dense<0xFF800000> : vector<128xf32>
      %11 = vector.multi_reduction <maximumf>, %10, %cst_7 [1] : vector<128x128xf32> to vector<128xf32>
      %12 = vector.shape_cast %11 : vector<128xf32> to vector<128x1xf32>
      %13 = vector.broadcast %12 : vector<128x1xf32> to vector<128x128xf32>
      %14 = arith.subf %10, %13 : vector<128x128xf32>
      %15 = math.exp %14 : vector<128x128xf32>
      %cst_8 = arith.constant dense<0.000000e+00> : vector<128xf32>
      %16 = vector.multi_reduction <add>, %15, %cst_8 [1] : vector<128x128xf32> to vector<128xf32>
      %17 = vector.shape_cast %16 : vector<128xf32> to vector<128x1xf32>
      %18 = vector.broadcast %17 : vector<128x1xf32> to vector<128x128xf32>
      %19 = arith.divf %15, %18 : vector<128x128xf32>
      %c0_9 = arith.constant 0 : index
      %c0_10 = arith.constant 0 : index
      %20 = vector.load %arg4[%c0_9, %c0_10] : memref<32x32xf32, #tpu.memory_space<vmem>>, vector<32x32xf32>
      %cst_11 = arith.constant dense<0.000000e+00> : vector<32x128xf32>
      %21 = tpu.matmul %20, %7, %cst_11 {dimension_numbers = #tpu.dot_dimension_numbers<[1], [0], [0], [1], [0, 0, 1, 1], [], []>} : vector<32x32xf32>, vector<32x128xf32>, vector<32x128xf32> -> vector<32x128xf32>
      %c0_12 = arith.constant 0 : index
      %c0_13 = arith.constant 0 : index
      %22 = vector.load %arg5[%c0_12, %c0_13] : memref<32x1xf32, #tpu.memory_space<vmem>>, vector<32x1xf32>
      %23 = vector.broadcast %22 : vector<32x1xf32> to vector<32x128xf32>
      %24 = arith.addf %21, %23 : vector<32x128xf32>
      %cst_14 = arith.constant dense<0.000000e+00> : vector<32x128xf32>
      %25 = tpu.matmul %24, %19, %cst_14 {dimension_numbers = #tpu.dot_dimension_numbers<[1], [0], [0], [1], [0, 0, 1, 1], [], []>} : vector<32x128xf32>, vector<128x128xf32>, vector<32x128xf32> -> vector<32x128xf32>
      %c0_15 = arith.constant 0 : index
      %c0_16 = arith.constant 0 : index
      %26 = vector.load %arg6[%c0_15, %c0_16] : memref<32x32xf32, #tpu.memory_space<vmem>>, vector<32x32xf32>
      %cst_17 = arith.constant dense<0.000000e+00> : vector<32x128xf32>
      %27 = tpu.matmul %26, %25, %cst_17 {dimension_numbers = #tpu.dot_dimension_numbers<[1], [0], [0], [1], [0, 0, 1, 1], [], []>} : vector<32x32xf32>, vector<32x128xf32>, vector<32x128xf32> -> vector<32x128xf32>
      %c0_18 = arith.constant 0 : index
      %c0_19 = arith.constant 0 : index
      %28 = vector.load %arg7[%c0_18, %c0_19] : memref<32x1xf32, #tpu.memory_space<vmem>>, vector<32x1xf32>
      %29 = vector.broadcast %28 : vector<32x1xf32> to vector<32x128xf32>
      %30 = arith.addf %27, %29 : vector<32x128xf32>
      %31 = arith.index_cast %arg1 : i32 to index
      %c0_20 = arith.constant 0 : index
      %c0_21 = arith.constant 0 : index
      %32 = vector.load %arg11[%31, %c0_20, %c0_21] : memref<2x32x128xf32, #tpu.memory_space<vmem>>, vector<1x32x128xf32>
      %33 = vector.shape_cast %32 : vector<1x32x128xf32> to vector<32x128xf32>
      %34 = vector.shape_cast %30 : vector<32x128xf32> to vector<1x32x128xf32>
      tpu.vector_store %arg11[%31, %c0_20, %c0_21], %34 {strides = array<i32>} : memref<2x32x128xf32, #tpu.memory_space<vmem>>, vector<1x32x128xf32>,
    } else {
    }
    %c1_i32 = arith.constant 1 : i32
    %3 = arith.cmpi eq, %arg0, %c1_i32 : i32
    %4 = arith.extui %3 : i1 to i32
    %c0_i32_1 = arith.constant 0 : i32
    %5 = arith.cmpi ne, %4, %c0_i32_1 : i32
    scf.if %5 {
      %c0_i32_2 = arith.constant 0 : i32
      %6 = arith.cmpi eq, %arg1, %c0_i32_2 : i32
      %7 = arith.extui %6 : i1 to i32
      %c0_i32_3 = arith.constant 0 : i32
      %8 = arith.cmpi ne, %7, %c0_i32_3 : i32
      scf.if %8 {
        %cst_15 = arith.constant 0.000000e+00 : f32
        %26 = vector.broadcast %cst_15 : f32 to vector<32x1xf32>
        %c0_16 = arith.constant 0 : index
        %c0_17 = arith.constant 0 : index
        %c0_18 = arith.constant 0 : index
        %27 = vector.load %arg11[%c0_16, %c0_17, %c0_18] : memref<2x32x128xf32, #tpu.memory_space<vmem>>, vector<1x32x128xf32>
        %28 = vector.shape_cast %27 : vector<1x32x128xf32> to vector<32x128xf32>
        %cst_19 = arith.constant dense<0.000000e+00> : vector<32xf32>
        %29 = vector.multi_reduction <add>, %28, %cst_19 [1] : vector<32x128xf32> to vector<32xf32>
        %30 = vector.shape_cast %29 : vector<32xf32> to vector<32x1xf32>
        %31 = arith.addf %26, %30 : vector<32x1xf32>
        %c1 = arith.constant 1 : index
        %c0_20 = arith.constant 0 : index
        %c0_21 = arith.constant 0 : index
        %32 = vector.load %arg11[%c1, %c0_20, %c0_21] : memref<2x32x128xf32, #tpu.memory_space<vmem>>, vector<1x32x128xf32>
        %33 = vector.shape_cast %32 : vector<1x32x128xf32> to vector<32x128xf32>
        %cst_22 = arith.constant dense<0.000000e+00> : vector<32xf32>
        %34 = vector.multi_reduction <add>, %33, %cst_22 [1] : vector<32x128xf32> to vector<32xf32>
        %35 = vector.shape_cast %34 : vector<32xf32> to vector<32x1xf32>
        %36 = arith.addf %31, %35 : vector<32x1xf32>
        %cst_23 = arith.constant 3.906250e-03 : f32
        %37 = vector.broadcast %cst_23 : f32 to vector<32x1xf32>
        %38 = arith.mulf %36, %37 : vector<32x1xf32>
        %cst_24 = arith.constant 0.000000e+00 : f32
        %39 = vector.broadcast %cst_24 : f32 to vector<32x1xf32>
        %c0_25 = arith.constant 0 : index
        %c0_26 = arith.constant 0 : index
        %c0_27 = arith.constant 0 : index
        %40 = vector.load %arg11[%c0_25, %c0_26, %c0_27] : memref<2x32x128xf32, #tpu.memory_space<vmem>>, vector<1x32x128xf32>
        %41 = vector.shape_cast %40 : vector<1x32x128xf32> to vector<32x128xf32>
        %42 = vector.broadcast %38 : vector<32x1xf32> to vector<32x128xf32>
        %43 = arith.subf %41, %42 : vector<32x128xf32>
        %44 = arith.mulf %43, %43 : vector<32x128xf32>
        %cst_28 = arith.constant dense<0.000000e+00> : vector<32xf32>
        %45 = vector.multi_reduction <add>, %44, %cst_28 [1] : vector<32x128xf32> to vector<32xf32>
        %46 = vector.shape_cast %45 : vector<32xf32> to vector<32x1xf32>
        %47 = arith.addf %39, %46 : vector<32x1xf32>
        %c1_29 = arith.constant 1 : index
        %c0_30 = arith.constant 0 : index
        %c0_31 = arith.constant 0 : index
        %48 = vector.load %arg11[%c1_29, %c0_30, %c0_31] : memref<2x32x128xf32, #tpu.memory_space<vmem>>, vector<1x32x128xf32>
        %49 = vector.shape_cast %48 : vector<1x32x128xf32> to vector<32x128xf32>
        %50 = vector.broadcast %38 : vector<32x1xf32> to vector<32x128xf32>
        %51 = arith.subf %49, %50 : vector<32x128xf32>
        %52 = arith.mulf %51, %51 : vector<32x128xf32>
        %cst_32 = arith.constant dense<0.000000e+00> : vector<32xf32>
        %53 = vector.multi_reduction <add>, %52, %cst_32 [1] : vector<32x128xf32> to vector<32xf32>
        %54 = vector.shape_cast %53 : vector<32xf32> to vector<32x1xf32>
        %55 = arith.addf %47, %54 : vector<32x1xf32>
        %cst_33 = arith.constant 3.906250e-03 : f32
        %56 = vector.broadcast %cst_33 : f32 to vector<32x1xf32>
        %57 = arith.mulf %55, %56 : vector<32x1xf32>
        %cst_34 = arith.constant 9.99999974E-6 : f32
        %58 = vector.broadcast %cst_34 : f32 to vector<32x1xf32>
        %59 = arith.addf %57, %58 : vector<32x1xf32>
        %60 = math.rsqrt %59 : vector<32x1xf32>
        %c0_35 = arith.constant 0 : index
        %c0_36 = arith.constant 0 : index
        %61 = vector.load %arg8[%c0_35, %c0_36] : memref<32x1xf32, #tpu.memory_space<vmem>>, vector<32x1xf32>
        %62 = arith.mulf %61, %60 : vector<32x1xf32>
        %c0_37 = arith.constant 0 : index
        %c0_38 = arith.constant 0 : index
        %63 = vector.load %arg12[%c0_37, %c0_38] : memref<32x1xf32, #tpu.memory_space<vmem>>, vector<32x1xf32>
        tpu.vector_store %arg12[%c0_37, %c0_38], %62 {strides = array<i32>} : memref<32x1xf32, #tpu.memory_space<vmem>>, vector<32x1xf32>,
        %c0_39 = arith.constant 0 : index
        %c0_40 = arith.constant 0 : index
        %64 = vector.load %arg9[%c0_39, %c0_40] : memref<32x1xf32, #tpu.memory_space<vmem>>, vector<32x1xf32>
        %c0_41 = arith.constant 0 : index
        %c0_42 = arith.constant 0 : index
        %65 = vector.load %arg8[%c0_41, %c0_42] : memref<32x1xf32, #tpu.memory_space<vmem>>, vector<32x1xf32>
        %66 = arith.mulf %38, %65 : vector<32x1xf32>
        %67 = arith.mulf %66, %60 : vector<32x1xf32>
        %68 = arith.subf %64, %67 : vector<32x1xf32>
        %c0_43 = arith.constant 0 : index
        %c0_44 = arith.constant 0 : index
        %69 = vector.load %arg13[%c0_43, %c0_44] : memref<32x1xf32, #tpu.memory_space<vmem>>, vector<32x1xf32>
        tpu.vector_store %arg13[%c0_43, %c0_44], %68 {strides = array<i32>} : memref<32x1xf32, #tpu.memory_space<vmem>>, vector<32x1xf32>,
      } else {
      }
      %9 = arith.index_cast %arg1 : i32 to index
      %c0 = arith.constant 0 : index
      %c0_4 = arith.constant 0 : index
      %10 = vector.load %arg11[%9, %c0, %c0_4] : memref<2x32x128xf32, #tpu.memory_space<vmem>>, vector<1x32x128xf32>
      %11 = vector.shape_cast %10 : vector<1x32x128xf32> to vector<32x128xf32>
      %c0_5 = arith.constant 0 : index
      %c0_6 = arith.constant 0 : index
      %c0_7 = arith.constant 0 : index
      %12 = vector.load %arg2[%c0_5, %c0_6, %c0_7] : memref<1x32x128xf32, #tpu.memory_space<vmem>>, vector<1x32x128xf32>
      %13 = vector.shape_cast %12 : vector<1x32x128xf32> to vector<32x128xf32>
      %c0_8 = arith.constant 0 : index
      %c0_9 = arith.constant 0 : index
      %14 = vector.load %arg12[%c0_8, %c0_9] : memref<32x1xf32, #tpu.memory_space<vmem>>, vector<32x1xf32>
      %15 = vector.broadcast %14 : vector<32x1xf32> to vector<32x128xf32>
      %16 = arith.mulf %11, %15 : vector<32x128xf32>
      %c0_10 = arith.constant 0 : index
      %c0_11 = arith.constant 0 : index
      %17 = vector.load %arg13[%c0_10, %c0_11] : memref<32x1xf32, #tpu.memory_space<vmem>>, vector<32x1xf32>
      %18 = vector.broadcast %17 : vector<32x1xf32> to vector<32x128xf32>
      %19 = arith.addf %16, %18 : vector<32x128xf32>
      %cst = arith.constant 0.000000e+00 : f32
      %20 = vector.broadcast %cst : f32 to vector<32x128xf32>
      %21 = arith.maximumf %19, %20 : vector<32x128xf32>
      %22 = arith.addf %13, %21 : vector<32x128xf32>
      %c0_12 = arith.constant 0 : index
      %c0_13 = arith.constant 0 : index
      %c0_14 = arith.constant 0 : index
      %23 = vector.load %arg10[%c0_12, %c0_13, %c0_14] : memref<1x32x128xf32, #tpu.memory_space<vmem>>, vector<1x32x128xf32>
      %24 = vector.shape_cast %23 : vector<1x32x128xf32> to vector<32x128xf32>
      %25 = vector.shape_cast %22 : vector<32x128xf32> to vector<1x32x128xf32>
      tpu.vector_store %arg10[%c0_12, %c0_13, %c0_14], %25 {strides = array<i32>} : memref<1x32x128xf32, #tpu.memory_space<vmem>>, vector<1x32x128xf32>,
    } else {
    }
    return
  }
  func.func @transform_0(%arg0: i32, %arg1: i32) -> (i32, i32, i32) {
    %c0_i32 = arith.constant 0 : i32
    %c0_i32_0 = arith.constant 0 : i32
    %c0_i32_1 = arith.constant 0 : i32
    return %arg1, %c0_i32, %c0_i32_0 : i32, i32, i32
  }
  func.func @transform_1(%arg0: i32, %arg1: i32) -> (i32, i32) {
    %c0_i32 = arith.constant 0 : i32
    %c0_i32_0 = arith.constant 0 : i32
    %c0_i32_1 = arith.constant 0 : i32
    return %c0_i32, %c0_i32_0 : i32, i32
  }
  func.func @transform_2(%arg0: i32, %arg1: i32) -> (i32, i32) {
    %c0_i32 = arith.constant 0 : i32
    %c0_i32_0 = arith.constant 0 : i32
    %c0_i32_1 = arith.constant 0 : i32
    return %c0_i32, %c0_i32_0 : i32, i32
  }
  func.func @transform_3(%arg0: i32, %arg1: i32) -> (i32, i32) {
    %c0_i32 = arith.constant 0 : i32
    %c0_i32_0 = arith.constant 0 : i32
    %c0_i32_1 = arith.constant 0 : i32
    return %c0_i32, %c0_i32_0 : i32, i32
  }
  func.func @transform_4(%arg0: i32, %arg1: i32) -> (i32, i32) {
    %c0_i32 = arith.constant 0 : i32
    %c0_i32_0 = arith.constant 0 : i32
    %c0_i32_1 = arith.constant 0 : i32
    return %c0_i32, %c0_i32_0 : i32, i32
  }
  func.func @transform_5(%arg0: i32, %arg1: i32) -> (i32, i32) {
    %c0_i32 = arith.constant 0 : i32
    %c0_i32_0 = arith.constant 0 : i32
    %c0_i32_1 = arith.constant 0 : i32
    return %c0_i32, %c0_i32_0 : i32, i32
  }
  func.func @transform_6(%arg0: i32, %arg1: i32) -> (i32, i32) {
    %c0_i32 = arith.constant 0 : i32
    %c0_i32_0 = arith.constant 0 : i32
    %c0_i32_1 = arith.constant 0 : i32
    return %c0_i32, %c0_i32_0 : i32, i32
  }
  func.func @transform_7(%arg0: i32, %arg1: i32) -> (i32, i32) {
    %c0_i32 = arith.constant 0 : i32
    %c0_i32_0 = arith.constant 0 : i32
    %c0_i32_1 = arith.constant 0 : i32
    return %c0_i32, %c0_i32_0 : i32, i32
  }
  func.func @transform_8(%arg0: i32, %arg1: i32) -> (i32, i32, i32) {
    %0 = arith.muli %arg1, %arg0 : i32
    %c0_i32 = arith.constant 0 : i32
    %c0_i32_0 = arith.constant 0 : i32
    %c0_i32_1 = arith.constant 0 : i32
    return %0, %c0_i32, %c0_i32_0 : i32, i32, i32
  }
}

</mosaic_0001>

<llo_original>
// kernel: tpu_custom_call.1
$region0: #{tpu_custom_call.1}
  #allocation0 [shape = 'u32[]', space=smem, size = 0x4, offset = 0x4, fixed_abs, tag = 'smem constant byte address 0x4 - core index']
  #allocation1 [shape = 'u32[144,128]{1,0:T(1,128)}', space=vmem, size = 0x12000, scoped, tag = 'internal scratch']
  #allocation2 [shape = 'f32[2,32,128]{2,1,0:T(8,128)}', space=vmem, size = 0x8000, scoped, tag = 'scratch operand']
  #allocation3 [shape = 'f32[32,1]{1,0:T(8,128)}', space=vmem, size = 0x4000, scoped, tag = 'scratch operand']
  #allocation4 [shape = 'f32[32,1]{1,0:T(8,128)}', space=vmem, size = 0x4000, scoped, tag = 'scratch operand']
  %s0 = inlined_call_operand.vmem [shape: f32[2,32,128], index: 0, kind: input, shape index: {}]
  %s1 = inlined_call_operand.vmem [shape: f32[32,32], index: 1, kind: input, shape index: {}]
  %s2 = inlined_call_operand.vmem [shape: f32[32,32], index: 2, kind: input, shape index: {}]
  %s3 = inlined_call_operand.vmem [shape: f32[32,1], index: 3, kind: input, shape index: {}]
  %s4 = inlined_call_operand.hbm [shape: f32[32,32], index: 4, kind: input, shape index: {}]
  %s5 = inlined_call_operand.vmem [shape: f32[32,1], index: 5, kind: input, shape index: {}]
  %s6 = inlined_call_operand.vmem [shape: f32[32,1], index: 6, kind: input, shape index: {}]
  %s7 = inlined_call_operand.vmem [shape: f32[32,1], index: 7, kind: input, shape index: {}]
  %s8 = inlined_call_operand.hbm [shape: f32[2,32,128], index: 8, kind: output, shape index: {}]
  %s9 = sld [smem:[#allocation0]]
  $region81: #{tpu_custom_call.1} parent=0
    _
  %s11 = ssub.s32 1, %s9
  %s12 = scalar_select 0, %s11, %s9
  $region1: #{tpu_custom_call.1} parent=0
    #allocation5 [shape = 'u8[16384]{0}', space=vmem, size = 0x4000, scoped, tag = 'input window, operand 4, single buffered']
    #allocation6 [shape = 's32[2]{0}', space=sflag, size = 0x8, scoped, tag = 'scoped memory for tpu_custom_call.1']
    #allocation7 [shape = 's32[2]{0}', space=sflag, size = 0x8, scoped, tag = 'scoped memory for tpu_custom_call.1']
    #allocation8 [shape = 'u8[32768]{0}', space=vmem, size = 0x8000, scoped, tag = 'output window, operand 0']
    %13 = vsyncpa [#allocation6], 0
    %14 = vsyncpa [#allocation7], 0
    %s15 = scalar_lea.sflag [#allocation7], 1
    %16 = vsyncpa %s15, 0
    loop: start=0, step=1, limit=6
    $region2: #{tpu_custom_call.1} parent=1 // loop_pre_header
      _
    $region3: #{tpu_custom_call.1} parent=1 // loop_header
      %s18 = sphi 0, %s22
      %p19 = scmp.ge.s32.totalorder %s18, 6
      %s25 = sphi 0, %s37
      %s26 = sphi 0, %s33
      %s27 = sphi 0, %s25
      %s28 = sphi 0, %s26
      %s29 = sphi 0, %s27
      %s30 = sphi 0, %s28
      %s40 = sphi 0, %s42
      %s43 = sphi 0, %s40
      %s44 = sphi 0, %s43
      %s60 = sphi 0, %s44
      %s64 = sphi 0, %s64
      %s66 = sphi 0, %s64
      %s67 = sphi 0, %s66
      %s81 = sphi 0, %s67
      %s85 = sphi 0, %s85
      %s87 = sphi 0, %s85
      %s88 = sphi 0, %s87
      %s102 = sphi 0, %s88
      %s106 = sphi 0, %s106
      %s108 = sphi 0, %s106
      %s109 = sphi 0, %s108
      %s123 = sphi 0, %s109
      %s127 = sphi 0, %s127
      %s129 = sphi 0, %s127
      %s130 = sphi 0, %s129
      %s144 = sphi 0, %s130
      %s148 = sphi 0, %s148
      %s150 = sphi 0, %s148
      %s151 = sphi 0, %s150
      %s165 = sphi 0, %s151
      %s169 = sphi 0, %s169
      %s171 = sphi 0, %s169
      %s172 = sphi 0, %s171
      %s186 = sphi 0, %s172
      %s190 = sphi 0, %s190
      %s192 = sphi 0, %s190
      %s193 = sphi 0, %s192
      %s207 = sphi 0, %s193
      %s215 = sphi 0, %s217
      %s218 = sphi 0, %s215
      %s219 = sphi 0, %s218
      %s235 = sphi 0, %s219
    $region4: #{tpu_custom_call.1} parent=1 // loop_header_branch
      %21 = sbr.rel (%p19) target = $region8
    $region5: #{tpu_custom_call.1} parent=1 // loop_body
      %s23 = ssub.s32 %s18, 1
      %s24 = ssub.s32 %s18, 2
      %s31 = sadd.s32 1, %s26
      %p32 = scmp.ge.s32.totalorder %s31, 2
      %s33 = scalar_select %p32, 0, %s31
      %s34 = sadd.s32 1, %s25
      %s35 = scalar_select %p32, %s34, %s25
      %p36 = scmp.ge.s32.totalorder %s35, 2
      %s37 = scalar_select %p36, 0, %s35
      %s38 = ssub.s32 %s26, %s33
      %p39 = scmp.eq.s32.totalorder %s38, 0
      %s41 = sadd.s32 %s40, 1
      %s42 = scalar_select %p39, %s40, %s41
      %p45 = pneg %p39
      %p46 = scmp.eq.s32.totalorder %s18, 3
      %p47 = por %p45, %p46
      %p48 = scmp.ne.s32.totalorder %s40, %s43
      %p49 = scmp.eq.s32.totalorder %s18, 0
      %p50 = por %p48, %p49
      %p51 = scmp.ne.s32.totalorder %s40, %s43
      %p52 = scmp.eq.s32.totalorder %s23, 3
      %p53 = por %p51, %p52
      %p54 = scmp.ne.s32.totalorder %s43, %s44
      %p55 = scmp.eq.s32.totalorder %s23, 0
      %p56 = por %p54, %p55
      %p57 = scmp.ne.s32.totalorder %s43, %s44
      %p58 = scmp.eq.s32.totalorder %s24, 3
      %p59 = por %p57, %p58
      %p61 = scmp.ne.s32.totalorder %s44, %s60
      %p62 = scmp.eq.s32.totalorder %s24, 0
      %p63 = por %p61, %p62
      %s65 = sadd.s32 %s64, 1
      %p68 = scmp.eq.s32.totalorder %s18, 3
      %p69 = scmp.ne.s32.totalorder %s64, %s66
      %p70 = scmp.eq.s32.totalorder %s18, 0
      %p71 = por %p69, %p70
      %p72 = scmp.ne.s32.totalorder %s64, %s66
      %p73 = scmp.eq.s32.totalorder %s23, 3
      %p74 = por %p72, %p73
      %p75 = scmp.ne.s32.totalorder %s66, %s67
      %p76 = scmp.eq.s32.totalorder %s23, 0
      %p77 = por %p75, %p76
      %p78 = scmp.ne.s32.totalorder %s66, %s67
      %p79 = scmp.eq.s32.totalorder %s24, 3
      %p80 = por %p78, %p79
      %p82 = scmp.ne.s32.totalorder %s67, %s81
      %p83 = scmp.eq.s32.totalorder %s24, 0
      %p84 = por %p82, %p83
      %s86 = sadd.s32 %s85, 1
      %p89 = scmp.eq.s32.totalorder %s18, 3
      %p90 = scmp.ne.s32.totalorder %s85, %s87
      %p91 = scmp.eq.s32.totalorder %s18, 0
      %p92 = por %p90, %p91
      %p93 = scmp.ne.s32.totalorder %s85, %s87
      %p94 = scmp.eq.s32.totalorder %s23, 3
      %p95 = por %p93, %p94
      %p96 = scmp.ne.s32.totalorder %s87, %s88
      %p97 = scmp.eq.s32.totalorder %s23, 0
      %p98 = por %p96, %p97
      %p99 = scmp.ne.s32.totalorder %s87, %s88
      %p100 = scmp.eq.s32.totalorder %s24, 3
      %p101 = por %p99, %p100
      %p103 = scmp.ne.s32.totalorder %s88, %s102
      %p104 = scmp.eq.s32.totalorder %s24, 0
      %p105 = por %p103, %p104
      %s107 = sadd.s32 %s106, 1
      %p110 = scmp.eq.s32.totalorder %s18, 3
      %p111 = scmp.ne.s32.totalorder %s106, %s108
      %p112 = scmp.eq.s32.totalorder %s18, 0
      %p113 = por %p111, %p112
      %p114 = scmp.ne.s32.totalorder %s106, %s108
      %p115 = scmp.eq.s32.totalorder %s23, 3
      %p116 = por %p114, %p115
      %p117 = scmp.ne.s32.totalorder %s108, %s109
      %p118 = scmp.eq.s32.totalorder %s23, 0
      %p119 = por %p117, %p118
      %p120 = scmp.ne.s32.totalorder %s108, %s109
      %p121 = scmp.eq.s32.totalorder %s24, 3
      %p122 = por %p120, %p121
      %p124 = scmp.ne.s32.totalorder %s109, %s123
      %p125 = scmp.eq.s32.totalorder %s24, 0
      %p126 = por %p124, %p125
      %s128 = sadd.s32 %s127, 1
      %p131 = scmp.eq.s32.totalorder %s18, 3
      %p132 = scmp.ne.s32.totalorder %s127, %s129
      %p133 = scmp.eq.s32.totalorder %s18, 0
      %p134 = por %p132, %p133
      %p135 = scmp.ne.s32.totalorder %s127, %s129
      %p136 = scmp.eq.s32.totalorder %s23, 3
      %p137 = por %p135, %p136
      %p138 = scmp.ne.s32.totalorder %s129, %s130
      %p139 = scmp.eq.s32.totalorder %s23, 0
      %p140 = por %p138, %p139
      %p141 = scmp.ne.s32.totalorder %s129, %s130
      %p142 = scmp.eq.s32.totalorder %s24, 3
      %p143 = por %p141, %p142
      %p145 = scmp.ne.s32.totalorder %s130, %s144
      %p146 = scmp.eq.s32.totalorder %s24, 0
      %p147 = por %p145, %p146
      %s149 = sadd.s32 %s148, 1
      %p152 = scmp.eq.s32.totalorder %s18, 3
      %p153 = scmp.ne.s32.totalorder %s148, %s150
      %p154 = scmp.eq.s32.totalorder %s18, 0
      %p155 = por %p153, %p154
      %p156 = scmp.ne.s32.totalorder %s148, %s150
      %p157 = scmp.eq.s32.totalorder %s23, 3
      %p158 = por %p156, %p157
      %p159 = scmp.ne.s32.totalorder %s150, %s151
      %p160 = scmp.eq.s32.totalorder %s23, 0
      %p161 = por %p159, %p160
      %p162 = scmp.ne.s32.totalorder %s150, %s151
      %p163 = scmp.eq.s32.totalorder %s24, 3
      %p164 = por %p162, %p163
      %p166 = scmp.ne.s32.totalorder %s151, %s165
      %p167 = scmp.eq.s32.totalorder %s24, 0
      %p168 = por %p166, %p167
      %s170 = sadd.s32 %s169, 1
      %p173 = scmp.eq.s32.totalorder %s18, 3
      %p174 = scmp.ne.s32.totalorder %s169, %s171
      %p175 = scmp.eq.s32.totalorder %s18, 0
      %p176 = por %p174, %p175
      %p177 = scmp.ne.s32.totalorder %s169, %s171
      %p178 = scmp.eq.s32.totalorder %s23, 3
      %p179 = por %p177, %p178
      %p180 = scmp.ne.s32.totalorder %s171, %s172
      %p181 = scmp.eq.s32.totalorder %s23, 0
      %p182 = por %p180, %p181
      %p183 = scmp.ne.s32.totalorder %s171, %s172
      %p184 = scmp.eq.s32.totalorder %s24, 3
      %p185 = por %p183, %p184
      %p187 = scmp.ne.s32.totalorder %s172, %s186
      %p188 = scmp.eq.s32.totalorder %s24, 0
      %p189 = por %p187, %p188
      %s191 = sadd.s32 %s190, 1
      %p194 = scmp.eq.s32.totalorder %s18, 3
      %p195 = scmp.ne.s32.totalorder %s190, %s192
      %p196 = scmp.eq.s32.totalorder %s18, 0
      %p197 = por %p195, %p196
      %p198 = scmp.ne.s32.totalorder %s190, %s192
      %p199 = scmp.eq.s32.totalorder %s23, 3
      %p200 = por %p198, %p199
      %p201 = scmp.ne.s32.totalorder %s192, %s193
      %p202 = scmp.eq.s32.totalorder %s23, 0
      %p203 = por %p201, %p202
      %p204 = scmp.ne.s32.totalorder %s192, %s193
      %p205 = scmp.eq.s32.totalorder %s24, 3
      %p206 = por %p204, %p205
      %p208 = scmp.ne.s32.totalorder %s193, %s207
      %p209 = scmp.eq.s32.totalorder %s24, 0
      %p210 = por %p208, %p209
      %s211 = smul.u32 %s26, %s25
      %s212 = smul.u32 %s33, %s37
      %s213 = ssub.s32 %s211, %s212
      %p214 = scmp.eq.s32.totalorder %s213, 0
      %s216 = sadd.s32 %s215, 1
      %s217 = scalar_select %p214, %s215, %s216
      %p220 = pneg %p214
      %p221 = scmp.eq.s32.totalorder %s18, 3
      %p222 = por %p220, %p221
      %p223 = scmp.ne.s32.totalorder %s215, %s218
      %p224 = scmp.eq.s32.totalorder %s18, 0
      %p225 = por %p223, %p224
      %p226 = scmp.ne.s32.totalorder %s215, %s218
      %p227 = scmp.eq.s32.totalorder %s23, 3
      %p228 = por %p226, %p227
      %p229 = scmp.ne.s32.totalorder %s218, %s219
      %p230 = scmp.eq.s32.totalorder %s23, 0
      %p231 = por %p229, %p230
      %p232 = scmp.ne.s32.totalorder %s218, %s219
      %p233 = scmp.eq.s32.totalorder %s24, 3
      %p234 = por %p232, %p233
      %p236 = scmp.ne.s32.totalorder %s219, %s235
      %p237 = scmp.eq.s32.totalorder %s24, 0
      %p238 = por %p236, %p237
      %p239 = scmp.le.s32.totalorder 1, %s18
      %p240 = scmp.lt.s32.totalorder %s18, 5
      %p241 = pnand %p239, %p240
      %p242 = pneg %p241
      // Predicated region
      $region9: #{tpu_custom_call.1} parent=5 // pred_check
        _
      $region10: #{tpu_custom_call.1} parent=5 // pred_check_branch
        %244 = sbr.rel (%p241) target = $region12
      $region11: #{tpu_custom_call.1} parent=5 // pred_region
        %s245 = ssub.s32 %s18, 1
        // Predicated region
        $region13: #{tpu_custom_call.1} parent=11 // pred_check
          %p246 = pneg %p77
        $region14: #{tpu_custom_call.1} parent=11 // pred_check_branch
          %248 = sbr.rel (%p246) target = $region16
        $region15: #{tpu_custom_call.1} parent=11 // pred_region
          _
        $region16: #{tpu_custom_call.1} parent=11 // pred_fallthru
          _
        // Predicated region
        $region17: #{tpu_custom_call.1} parent=11 // pred_check
          %p249 = pneg %p98
        $region18: #{tpu_custom_call.1} parent=11 // pred_check_branch
          %251 = sbr.rel (%p249) target = $region20
        $region19: #{tpu_custom_call.1} parent=11 // pred_region
          _
        $region20: #{tpu_custom_call.1} parent=11 // pred_fallthru
          _
        // Predicated region
        $region21: #{tpu_custom_call.1} parent=11 // pred_check
          %p252 = pneg %p119
        $region22: #{tpu_custom_call.1} parent=11 // pred_check_branch
          %254 = sbr.rel (%p252) target = $region24
        $region23: #{tpu_custom_call.1} parent=11 // pred_region
          _
        $region24: #{tpu_custom_call.1} parent=11 // pred_fallthru
          _
        // Predicated region
        $region25: #{tpu_custom_call.1} parent=11 // pred_check
          %p255 = pneg %p140
        $region26: #{tpu_custom_call.1} parent=11 // pred_check_branch
          %257 = sbr.rel (%p255) target = $region28
        $region27: #{tpu_custom_call.1} parent=11 // pred_region
          %s259 = ssub.s32 512, 512
          %260 = vsyncadd [#allocation6], %s259
          %s261 = sshll.u32 [#allocation5], 4
          %s262 = int_to_ptr.vmem [resolvable:$true] %s261
          %267 = dma.hbm_to_vmem [thread:$0]  %s4, 512, %s262, [#allocation6], 128, 128, 8
        $region28: #{tpu_custom_call.1} parent=11 // pred_fallthru
          _
        // Predicated region
        $region29: #{tpu_custom_call.1} parent=11 // pred_check
          %p268 = pneg %p161
        $region30: #{tpu_custom_call.1} parent=11 // pred_check_branch
          %270 = sbr.rel (%p268) target = $region32
        $region31: #{tpu_custom_call.1} parent=11 // pred_region
          _
        $region32: #{tpu_custom_call.1} parent=11 // pred_fallthru
          _
        // Predicated region
        $region33: #{tpu_custom_call.1} parent=11 // pred_check
          %p271 = pneg %p182
        $region34: #{tpu_custom_call.1} parent=11 // pred_check_branch
          %273 = sbr.rel (%p271) target = $region36
        $region35: #{tpu_custom_call.1} parent=11 // pred_region
          _
        $region36: #{tpu_custom_call.1} parent=11 // pred_fallthru
          _
        // Predicated region
        $region37: #{tpu_custom_call.1} parent=11 // pred_check
          %p274 = pneg %p203
        $region38: #{tpu_custom_call.1} parent=11 // pred_check_branch
          %276 = sbr.rel (%p274) target = $region40
        $region39: #{tpu_custom_call.1} parent=11 // pred_region
          _
        $region40: #{tpu_custom_call.1} parent=11 // pred_fallthru
          _
      $region12: #{tpu_custom_call.1} parent=5 // pred_fallthru
        _
      %p277 = scmp.lt.s32.totalorder %s18, 4
      // Predicated region
      $region41: #{tpu_custom_call.1} parent=5 // pred_check
        %p278 = pneg %p277
      $region42: #{tpu_custom_call.1} parent=5 // pred_check_branch
        %280 = sbr.rel (%p278) target = $region44
      $region43: #{tpu_custom_call.1} parent=5 // pred_region
        // Predicated region
        $region45: #{tpu_custom_call.1} parent=43 // pred_check
          %p281 = pneg %p50
        $region46: #{tpu_custom_call.1} parent=43 // pred_check_branch
          %283 = sbr.rel (%p281) target = $region48
        $region47: #{tpu_custom_call.1} parent=43 // pred_region
          %p284 = scmp.lt.s32.totalorder %s26, 1
          %s285 = scalar_select %p284, %s26, 1
          %s286 = smul.addr %s285, 4
          %s287 = smul.addr %s286, 8
          %s288 = scalar_lea.vmem %s0, %s287
        $region48: #{tpu_custom_call.1} parent=43 // pred_fallthru
          _
      $region44: #{tpu_custom_call.1} parent=5 // pred_fallthru
        _
      %p289 = scmp.le.s32.totalorder 1, %s18
      %p290 = scmp.lt.s32.totalorder %s18, 5
      %p291 = pnand %p289, %p290
      %p292 = pneg %p291
      // Predicated region
      $region49: #{tpu_custom_call.1} parent=5 // pred_check
        _
      $region50: #{tpu_custom_call.1} parent=5 // pred_check_branch
        %294 = sbr.rel (%p291) target = $region52
      $region51: #{tpu_custom_call.1} parent=5 // pred_region
        %s295 = ssub.s32 %s18, 1
        // Predicated region
        $region53: #{tpu_custom_call.1} parent=51 // pred_check
          %p296 = pneg %p140
        $region54: #{tpu_custom_call.1} parent=51 // pred_check_branch
          %298 = sbr.rel (%p296) target = $region56
        $region55: #{tpu_custom_call.1} parent=51 // pred_region
          %299 = dma.done [#allocation6], 512
        $region56: #{tpu_custom_call.1} parent=51 // pred_fallthru
          _
        %p300 = scmp.lt.s32.totalorder %s28, 1
        %s301 = scalar_select %p300, %s28, 1
        %s302 = smul.addr %s301, 4
        %s303 = smul.addr %s302, 8
        %s304 = scalar_lea.vmem %s0, %s303
        %p305 = pneg %p56
        %p306 = pneg %p53
        %p307 = pneg %p77
        %p308 = pneg %p74
        %p309 = pneg %p98
        %p310 = pneg %p95
        %p311 = pneg %p119
        %p312 = pneg %p116
        %p313 = pneg %p140
        %p314 = pneg %p137
        %p315 = pneg %p161
        %p316 = pneg %p158
        %p317 = pneg %p182
        %p318 = pneg %p179
        %p319 = pneg %p203
        %p320 = pneg %p200
        %p321 = pneg %p231
        %p322 = pneg %p228
        %s323 = sand.u32 %s218, 1
        %s324 = scalar_lea.sflag [#allocation7], %s323
        %s325 = sand.u32 %s218, 1
        %s326 = smul.addr %s325, 32
        %s327 = scalar_lea.vmem [#allocation8], %s326
        %p328 = scmp.lt.s32.totalorder %s28, 1
        %s329 = scalar_select %p328, %s28, 1
        %s330 = smul.addr %s329, 4
        %s331 = smul.addr %s330, 8
        %s332 = scalar_lea.vmem %s0, %s331
        %s333 = smul.u32 %s28, %s27
        %p334 = scmp.eq.s32.totalorder %s27, 0
        // Predicated region
        $region57: #{tpu_custom_call.1} parent=51 // pred_check
          %p335 = pneg %p334
        $region58: #{tpu_custom_call.1} parent=51 // pred_check_branch
          %337 = sbr.rel (%p335) target = $region60
        $region59: #{tpu_custom_call.1} parent=51 // pred_region
          %v338 = vld [vmem:[%s332] sm:$0xff]
          %v339 = vld [vmem:[%s332 + $0x8] sm:$0xff]
          %v340 = vld [vmem:[%s332 + $0x10] sm:$0xff]
          %v341 = vld [vmem:[%s332 + $0x18] sm:$0xff]
          %v342 = vld [vmem:[%s1] sm:$0xff]
          %v343 = vld [vmem:[%s1 + $0x8] sm:$0xff]
          %v344 = vld [vmem:[%s1 + $0x10] sm:$0xff]
          %v345 = vld [vmem:[%s1 + $0x18] sm:$0xff]
          %vm346 = vcmask 261120
          %v348 = vsel %vm346, %v342, 0
          %v351 = vsel %vm346, %v343, 0
          %v354 = vsel %vm346, %v344, 0
          %v357 = vsel %vm346, %v345, 0
          %359 = vmatprep.subr.mxu0 0.0
          %360 = vmatpush1.msra.mxu0 0.0
          %361 = vmatprep.subr.mxu0 0.0
          %362 = vmatpush1.msra.mxu0 0.0
          %363 = vmatprep.subr.mxu0 0.0
          %364 = vmatpush1.msra.mxu0 0.0
          %365 = vmatprep.subr.mxu0 0.0
          %366 = vmatpush1.msra.mxu0 0.0
          %367 = vmatprep.subr.mxu0 0.0
          %368 = vmatpush1.msra.mxu0 0.0
          %369 = vmatprep.subr.mxu0 0.0
          %370 = vmatpush1.msra.mxu0 0.0
          %371 = vmatprep.subr.mxu0 0.0
          %372 = vmatpush1.msra.mxu0 0.0
          %373 = vmatprep.subr.mxu0 0.0
          %374 = vmatpush1.msra.mxu0 0.0
          %375 = vmatprep.subr.mxu0 0.0
          %376 = vmatpush1.msra.mxu0 0.0
          %377 = vmatprep.subr.mxu0 0.0
          %378 = vmatpush1.msra.mxu0 0.0
          %379 = vmatprep.subr.mxu0 0.0
          %380 = vmatpush1.msra.mxu0 0.0
          %381 = vmatprep.subr.mxu0 0.0
          %382 = vmatpush1.msra.mxu0 0.0
          %383 = vmatprep.subr.mxu0 0.0
          %384 = vmatpush1.msra.mxu0 %v341
          %385 = vmatprep.subr.mxu0 0.0
          %386 = vmatpush1.msra.mxu0 %v340
          %387 = vmatprep.subr.mxu0 0.0
          %388 = vmatpush1.msra.mxu0 %v339
          %389 = vmatprep.subr.mxu0 0.0
          %390 = vmatpush1.msra.mxu0 %v338
          %391 = vmatprep.subr.mxu0 0.0
          %392 = vmatpush2.msra.mxu0 0.0
          %393 = vmatprep.subr.mxu0 0.0
          %394 = vmatpush2.msra.mxu0 0.0
          %395 = vmatprep.subr.mxu0 0.0
          %396 = vmatpush2.msra.mxu0 0.0
          %397 = vmatprep.subr.mxu0 0.0
          %398 = vmatpush2.msra.mxu0 0.0
          %399 = vmatprep.subr.mxu0 0.0
          %400 = vmatpush2.msra.mxu0 0.0
          %401 = vmatprep.subr.mxu0 0.0
          %402 = vmatpush2.msra.mxu0 0.0
          %403 = vmatprep.subr.mxu0 0.0
          %404 = vmatpush2.msra.mxu0 0.0
          %405 = vmatprep.subr.mxu0 0.0
          %406 = vmatpush2.msra.mxu0 0.0
          %407 = vmatprep.subr.mxu0 0.0
          %408 = vmatpush2.msra.mxu0 0.0
          %409 = vmatprep.subr.mxu0 0.0
          %410 = vmatpush2.msra.mxu0 0.0
          %411 = vmatprep.subr.mxu0 0.0
          %412 = vmatpush2.msra.mxu0 0.0
          %413 = vmatprep.subr.mxu0 0.0
          %414 = vmatpush2.msra.mxu0 0.0
          %415 = vmatprep.subr.mxu0 0.0
          %416 = vmatpush2.msra.mxu0 0.0
          %417 = vmatprep.subr.mxu0 0.0
          %418 = vmatpush2.msra.mxu0 0.0
          %419 = vmatprep.subr.mxu0 0.0
          %420 = vmatpush2.msra.mxu0 0.0
          %421 = vmatprep.subr.mxu0 0.0
          %422 = vmatpush2.msra.mxu0 0.0
          %423 = vmatprep.mubr.f32.mxu0 0.0
          %424 = vmatmul.mubr.f32.gmra.mxu0 %v348
          %v425 = vpop.f32.mrf.mxu0
          %v426 = vadd.f32 0.0, %v425
          %v427 = vpop.f32.mrf.mxu0
          %428 = vmatprep.mubr.f32.mxu0 0.0
          %429 = vmatmul.mubr.f32.gmra.mxu0 %v351
          %v430 = vpop.f32.mrf.mxu0
          %v431 = vadd.f32 0.0, %v430
          %v432 = vpop.f32.mrf.mxu0
          %433 = vmatprep.mubr.f32.mxu0 0.0
          %434 = vmatmul.mubr.f32.gmra.mxu0 %v354
          %v435 = vpop.f32.mrf.mxu0
          %v436 = vadd.f32 0.0, %v435
          %v437 = vpop.f32.mrf.mxu0
          %438 = vmatprep.mubr.f32.mxu0 0.0
          %439 = vmatmul.mubr.f32.gmra.mxu0 %v357
          %v440 = vpop.f32.mrf.mxu0
          %v441 = vadd.f32 0.0, %v440
          %v442 = vpop.f32.mrf.mxu0
          %443 = vdwg.mxu0
          %444 = vxpose.xlu0.b32.start [1/16] %v338, 128
          %445 = vxpose.xlu0.b32.cont [2/16] %v339, 128
          %446 = vxpose.xlu0.b32.cont [3/16] %v340, 128
          %447 = vxpose.xlu0.b32.cont [4/16] %v341, 128
          %448 = vxpose.xlu0.b32.cont [5/16] 0.0, 128
          %449 = vxpose.xlu0.b32.cont [6/16] 0.0, 128
          %450 = vxpose.xlu0.b32.cont [7/16] 0.0, 128
          %451 = vxpose.xlu0.b32.cont [8/16] 0.0, 128
          %452 = vxpose.xlu0.b32.cont [9/16] 0.0, 128
          %453 = vxpose.xlu0.b32.cont [10/16] 0.0, 128
          %454 = vxpose.xlu0.b32.cont [11/16] 0.0, 128
          %455 = vxpose.xlu0.b32.cont [12/16] 0.0, 128
          %456 = vxpose.xlu0.b32.cont [13/16] 0.0, 128
          %457 = vxpose.xlu0.b32.cont [14/16] 0.0, 128
          %458 = vxpose.xlu0.b32.cont [15/16] 0.0, 128
          %459 = vxpose.xlu0.b32.end [16/16] 0.0, 128
          %v460 = vpop.trf.xlu0
          %v461 = vpop.trf.xlu0
          %v462 = vpop.trf.xlu0
          %v463 = vpop.trf.xlu0
          %v464 = vpop.trf.xlu0
          %v465 = vpop.trf.xlu0
          %v466 = vpop.trf.xlu0
          %v467 = vpop.trf.xlu0
          %v468 = vpop.trf.xlu0
          %v469 = vpop.trf.xlu0
          %v470 = vpop.trf.xlu0
          %v471 = vpop.trf.xlu0
          %v472 = vpop.trf.xlu0
          %v473 = vpop.trf.xlu0
          %v474 = vpop.trf.xlu0
          %v475 = vpop.trf.xlu0
          %v477 = vsel %vm346, %v460, 0
          %v480 = vsel %vm346, %v461, 0
          %v483 = vsel %vm346, %v462, 0
          %v486 = vsel %vm346, %v463, 0
          %v489 = vsel %vm346, %v464, 0
          %v492 = vsel %vm346, %v465, 0
          %v495 = vsel %vm346, %v466, 0
          %v498 = vsel %vm346, %v467, 0
          %v501 = vsel %vm346, %v468, 0
          %v504 = vsel %vm346, %v469, 0
          %v507 = vsel %vm346, %v470, 0
          %v510 = vsel %vm346, %v471, 0
          %v513 = vsel %vm346, %v472, 0
          %v516 = vsel %vm346, %v473, 0
          %v519 = vsel %vm346, %v474, 0
          %v522 = vsel %vm346, %v475, 0
          %524 = vmatprep.subr.mxu0 0.0
          %525 = vmatpush1.msra.mxu0 0.0
          %526 = vmatprep.subr.mxu0 0.0
          %527 = vmatpush1.msra.mxu0 0.0
          %528 = vmatprep.subr.mxu0 0.0
          %529 = vmatpush1.msra.mxu0 0.0
          %530 = vmatprep.subr.mxu0 0.0
          %531 = vmatpush1.msra.mxu0 0.0
          %532 = vmatprep.subr.mxu0 0.0
          %533 = vmatpush1.msra.mxu0 0.0
          %534 = vmatprep.subr.mxu0 0.0
          %535 = vmatpush1.msra.mxu0 0.0
          %536 = vmatprep.subr.mxu0 0.0
          %537 = vmatpush1.msra.mxu0 0.0
          %538 = vmatprep.subr.mxu0 0.0
          %539 = vmatpush1.msra.mxu0 0.0
          %540 = vmatprep.subr.mxu0 0.0
          %541 = vmatpush1.msra.mxu0 0.0
          %542 = vmatprep.subr.mxu0 0.0
          %543 = vmatpush1.msra.mxu0 0.0
          %544 = vmatprep.subr.mxu0 0.0
          %545 = vmatpush1.msra.mxu0 0.0
          %546 = vmatprep.subr.mxu0 0.0
          %547 = vmatpush1.msra.mxu0 0.0
          %548 = vmatprep.subr.mxu0 0.0
          %549 = vmatpush1.msra.mxu0 %v441
          %550 = vmatprep.subr.mxu0 0.0
          %551 = vmatpush1.msra.mxu0 %v436
          %552 = vmatprep.subr.mxu0 0.0
          %553 = vmatpush1.msra.mxu0 %v431
          %554 = vmatprep.subr.mxu0 0.0
          %555 = vmatpush1.msra.mxu0 %v426
          %556 = vmatprep.subr.mxu0 0.0
          %557 = vmatpush2.msra.mxu0 0.0
          %558 = vmatprep.subr.mxu0 0.0
          %559 = vmatpush2.msra.mxu0 0.0
          %560 = vmatprep.subr.mxu0 0.0
          %561 = vmatpush2.msra.mxu0 0.0
          %562 = vmatprep.subr.mxu0 0.0
          %563 = vmatpush2.msra.mxu0 0.0
          %564 = vmatprep.subr.mxu0 0.0
          %565 = vmatpush2.msra.mxu0 0.0
          %566 = vmatprep.subr.mxu0 0.0
          %567 = vmatpush2.msra.mxu0 0.0
          %568 = vmatprep.subr.mxu0 0.0
          %569 = vmatpush2.msra.mxu0 0.0
          %570 = vmatprep.subr.mxu0 0.0
          %571 = vmatpush2.msra.mxu0 0.0
          %572 = vmatprep.subr.mxu0 0.0
          %573 = vmatpush2.msra.mxu0 0.0
          %574 = vmatprep.subr.mxu0 0.0
          %575 = vmatpush2.msra.mxu0 0.0
          %576 = vmatprep.subr.mxu0 0.0
          %577 = vmatpush2.msra.mxu0 0.0
          %578 = vmatprep.subr.mxu0 0.0
          %579 = vmatpush2.msra.mxu0 0.0
          %580 = vmatprep.subr.mxu0 0.0
          %581 = vmatpush2.msra.mxu0 0.0
          %582 = vmatprep.subr.mxu0 0.0
          %583 = vmatpush2.msra.mxu0 0.0
          %584 = vmatprep.subr.mxu0 0.0
          %585 = vmatpush2.msra.mxu0 0.0
          %586 = vmatprep.subr.mxu0 0.0
          %587 = vmatpush2.msra.mxu0 0.0
          %588 = vmatprep.mubr.f32.mxu0 0.0
          %589 = vmatmul.mubr.f32.gmra.mxu0 %v477
          %v590 = vpop.f32.mrf.mxu0
          %v591 = vadd.f32 0.0, %v590
          %v592 = vpop.f32.mrf.mxu0
          %593 = vmatprep.mubr.f32.mxu0 0.0
          %594 = vmatmul.mubr.f32.gmra.mxu0 %v480
          %v595 = vpop.f32.mrf.mxu0
          %v596 = vadd.f32 0.0, %v595
          %v597 = vpop.f32.mrf.mxu0
          %598 = vmatprep.mubr.f32.mxu0 0.0
          %599 = vmatmul.mubr.f32.gmra.mxu0 %v483
          %v600 = vpop.f32.mrf.mxu0
          %v601 = vadd.f32 0.0, %v600
          %v602 = vpop.f32.mrf.mxu0
          %603 = vmatprep.mubr.f32.mxu0 0.0
          %604 = vmatmul.mubr.f32.gmra.mxu0 %v486
          %v605 = vpop.f32.mrf.mxu0
          %v606 = vadd.f32 0.0, %v605
          %v607 = vpop.f32.mrf.mxu0
          %608 = vmatprep.mubr.f32.mxu0 0.0
          %609 = vmatmul.mubr.f32.gmra.mxu0 %v489
          %v610 = vpop.f32.mrf.mxu0
          %v611 = vadd.f32 0.0, %v610
          %v612 = vpop.f32.mrf.mxu0
          %613 = vmatprep.mubr.f32.mxu0 0.0
          %614 = vmatmul.mubr.f32.gmra.mxu0 %v492
          %v615 = vpop.f32.mrf.mxu0
          %v616 = vadd.f32 0.0, %v615
          %v617 = vpop.f32.mrf.mxu0
          %618 = vmatprep.mubr.f32.mxu0 0.0
          %619 = vmatmul.mubr.f32.gmra.mxu0 %v495
          %v620 = vpop.f32.mrf.mxu0
          %v621 = vadd.f32 0.0, %v620
          %v622 = vpop.f32.mrf.mxu0
          %623 = vmatprep.mubr.f32.mxu0 0.0
          %624 = vmatmul.mubr.f32.gmra.mxu0 %v498
          %v625 = vpop.f32.mrf.mxu0
          %v626 = vadd.f32 0.0, %v625
          %v627 = vpop.f32.mrf.mxu0
          %628 = vmatprep.mubr.f32.mxu0 0.0
          %629 = vmatmul.mubr.f32.gmra.mxu0 %v501
          %v630 = vpop.f32.mrf.mxu0
          %v631 = vadd.f32 0.0, %v630
          %v632 = vpop.f32.mrf.mxu0
          %633 = vmatprep.mubr.f32.mxu0 0.0
          %634 = vmatmul.mubr.f32.gmra.mxu0 %v504
          %v635 = vpop.f32.mrf.mxu0
          %v636 = vadd.f32 0.0, %v635
          %v637 = vpop.f32.mrf.mxu0
          %638 = vmatprep.mubr.f32.mxu0 0.0
          %639 = vmatmul.mubr.f32.gmra.mxu0 %v507
          %v640 = vpop.f32.mrf.mxu0
          %v641 = vadd.f32 0.0, %v640
          %v642 = vpop.f32.mrf.mxu0
          %643 = vmatprep.mubr.f32.mxu0 0.0
          %644 = vmatmul.mubr.f32.gmra.mxu0 %v510
          %v645 = vpop.f32.mrf.mxu0
          %v646 = vadd.f32 0.0, %v645
          %v647 = vpop.f32.mrf.mxu0
          %648 = vmatprep.mubr.f32.mxu0 0.0
          %649 = vmatmul.mubr.f32.gmra.mxu0 %v513
          %v650 = vpop.f32.mrf.mxu0
          %v651 = vadd.f32 0.0, %v650
          %v652 = vpop.f32.mrf.mxu0
          %653 = vmatprep.mubr.f32.mxu0 0.0
          %654 = vmatmul.mubr.f32.gmra.mxu0 %v516
          %v655 = vpop.f32.mrf.mxu0
          %v656 = vadd.f32 0.0, %v655
          %v657 = vpop.f32.mrf.mxu0
          %658 = vmatprep.mubr.f32.mxu0 0.0
          %659 = vmatmul.mubr.f32.gmra.mxu0 %v519
          %v660 = vpop.f32.mrf.mxu0
          %v661 = vadd.f32 0.0, %v660
          %v662 = vpop.f32.mrf.mxu0
          %663 = vmatprep.mubr.f32.mxu0 0.0
          %664 = vmatmul.mubr.f32.gmra.mxu0 %v522
          %v665 = vpop.f32.mrf.mxu0
          %v666 = vadd.f32 0.0, %v665
          %v667 = vpop.f32.mrf.mxu0
          %668 = vdwg.mxu0
          %669 = vmax.xlane.f32.xlu0 %v591
          %v670 = vpop.xlane.xlu0 %669
          %671 = vmax.xlane.f32.xlu0 %v596
          %v672 = vpop.xlane.xlu0 %671
          %673 = vmax.xlane.f32.xlu0 %v601
          %v674 = vpop.xlane.xlu0 %673
          %675 = vmax.xlane.f32.xlu0 %v606
          %v676 = vpop.xlane.xlu0 %675
          %677 = vmax.xlane.f32.xlu0 %v611
          %v678 = vpop.xlane.xlu0 %677
          %679 = vmax.xlane.f32.xlu0 %v616
          %v680 = vpop.xlane.xlu0 %679
          %681 = vmax.xlane.f32.xlu0 %v621
          %v682 = vpop.xlane.xlu0 %681
          %683 = vmax.xlane.f32.xlu0 %v626
          %v684 = vpop.xlane.xlu0 %683
          %685 = vmax.xlane.f32.xlu0 %v631
          %v686 = vpop.xlane.xlu0 %685
          %687 = vmax.xlane.f32.xlu0 %v636
          %v688 = vpop.xlane.xlu0 %687
          %689 = vmax.xlane.f32.xlu0 %v641
          %v690 = vpop.xlane.xlu0 %689
          %691 = vmax.xlane.f32.xlu0 %v646
          %v692 = vpop.xlane.xlu0 %691
          %693 = vmax.xlane.f32.xlu0 %v651
          %v694 = vpop.xlane.xlu0 %693
          %695 = vmax.xlane.f32.xlu0 %v656
          %v696 = vpop.xlane.xlu0 %695
          %697 = vmax.xlane.f32.xlu0 %v661
          %v698 = vpop.xlane.xlu0 %697
          %699 = vmax.xlane.f32.xlu0 %v666
          %v700 = vpop.xlane.xlu0 %699
          %v701 = vsub.f32 %v591, %v670
          %v702 = vsub.f32 %v596, %v672
          %v703 = vsub.f32 %v601, %v674
          %v704 = vsub.f32 %v606, %v676
          %v705 = vsub.f32 %v611, %v678
          %v706 = vsub.f32 %v616, %v680
          %v707 = vsub.f32 %v621, %v682
          %v708 = vsub.f32 %v626, %v684
          %v709 = vsub.f32 %v631, %v686
          %v710 = vsub.f32 %v636, %v688
          %v711 = vsub.f32 %v641, %v690
          %v712 = vsub.f32 %v646, %v692
          %v713 = vsub.f32 %v651, %v694
          %v714 = vsub.f32 %v656, %v696
          %v715 = vsub.f32 %v661, %v698
          %v716 = vsub.f32 %v666, %v700
          %v717 = vmul.f32 %v701, 1.442695
          %v718 = vpow.pop %v717
          %v719 = vmul.f32 %v702, 1.442695
          %v720 = vpow.pop %v719
          %v721 = vmul.f32 %v703, 1.442695
          %v722 = vpow.pop %v721
          %v723 = vmul.f32 %v704, 1.442695
          %v724 = vpow.pop %v723
          %v725 = vmul.f32 %v705, 1.442695
          %v726 = vpow.pop %v725
          %v727 = vmul.f32 %v706, 1.442695
          %v728 = vpow.pop %v727
          %v729 = vmul.f32 %v707, 1.442695
          %v730 = vpow.pop %v729
          %v731 = vmul.f32 %v708, 1.442695
          %v732 = vpow.pop %v731
          %v733 = vmul.f32 %v709, 1.442695
          %v734 = vpow.pop %v733
          %v735 = vmul.f32 %v710, 1.442695
          %v736 = vpow.pop %v735
          %v737 = vmul.f32 %v711, 1.442695
          %v738 = vpow.pop %v737
          %v739 = vmul.f32 %v712, 1.442695
          %v740 = vpow.pop %v739
          %v741 = vmul.f32 %v713, 1.442695
          %v742 = vpow.pop %v741
          %v743 = vmul.f32 %v714, 1.442695
          %v744 = vpow.pop %v743
          %v745 = vmul.f32 %v715, 1.442695
          %v746 = vpow.pop %v745
          %v747 = vmul.f32 %v716, 1.442695
          %v748 = vpow.pop %v747
          %749 = vadd.xlane.f32.xlu0 %v718
          %v750 = vpop.xlane.xlu0 %749
          %751 = vadd.xlane.f32.xlu0 %v720
          %v752 = vpop.xlane.xlu0 %751
          %753 = vadd.xlane.f32.xlu0 %v722
          %v754 = vpop.xlane.xlu0 %753
          %755 = vadd.xlane.f32.xlu0 %v724
          %v756 = vpop.xlane.xlu0 %755
          %757 = vadd.xlane.f32.xlu0 %v726
          %v758 = vpop.xlane.xlu0 %757
          %759 = vadd.xlane.f32.xlu0 %v728
          %v760 = vpop.xlane.xlu0 %759
          %761 = vadd.xlane.f32.xlu0 %v730
          %v762 = vpop.xlane.xlu0 %761
          %763 = vadd.xlane.f32.xlu0 %v732
          %v764 = vpop.xlane.xlu0 %763
          %765 = vadd.xlane.f32.xlu0 %v734
          %v766 = vpop.xlane.xlu0 %765
          %767 = vadd.xlane.f32.xlu0 %v736
          %v768 = vpop.xlane.xlu0 %767
          %769 = vadd.xlane.f32.xlu0 %v738
          %v770 = vpop.xlane.xlu0 %769
          %771 = vadd.xlane.f32.xlu0 %v740
          %v772 = vpop.xlane.xlu0 %771
          %773 = vadd.xlane.f32.xlu0 %v742
          %v774 = vpop.xlane.xlu0 %773
          %775 = vadd.xlane.f32.xlu0 %v744
          %v776 = vpop.xlane.xlu0 %775
          %777 = vadd.xlane.f32.xlu0 %v746
          %v778 = vpop.xlane.xlu0 %777
          %779 = vadd.xlane.f32.xlu0 %v748
          %v780 = vpop.xlane.xlu0 %779
          %v781 = vrcp.pop %v750
          %v782 = vmul.f32 %v718, %v781
          %v783 = vrcp.pop %v752
          %v784 = vmul.f32 %v720, %v783
          %v785 = vrcp.pop %v754
          %v786 = vmul.f32 %v722, %v785
          %v787 = vrcp.pop %v756
          %v788 = vmul.f32 %v724, %v787
          %v789 = vrcp.pop %v758
          %v790 = vmul.f32 %v726, %v789
          %v791 = vrcp.pop %v760
          %v792 = vmul.f32 %v728, %v791
          %v793 = vrcp.pop %v762
          %v794 = vmul.f32 %v730, %v793
          %v795 = vrcp.pop %v764
          %v796 = vmul.f32 %v732, %v795
          %v797 = vrcp.pop %v766
          %v798 = vmul.f32 %v734, %v797
          %v799 = vrcp.pop %v768
          %v800 = vmul.f32 %v736, %v799
          %v801 = vrcp.pop %v770
          %v802 = vmul.f32 %v738, %v801
          %v803 = vrcp.pop %v772
          %v804 = vmul.f32 %v740, %v803
          %v805 = vrcp.pop %v774
          %v806 = vmul.f32 %v742, %v805
          %v807 = vrcp.pop %v776
          %v808 = vmul.f32 %v744, %v807
          %v809 = vrcp.pop %v778
          %v810 = vmul.f32 %v746, %v809
          %v811 = vrcp.pop %v780
          %v812 = vmul.f32 %v748, %v811
          %v813 = vld [vmem:[%s2] sm:$0xff]
          %v814 = vld [vmem:[%s2 + $0x8] sm:$0xff]
          %v815 = vld [vmem:[%s2 + $0x10] sm:$0xff]
          %v816 = vld [vmem:[%s2 + $0x18] sm:$0xff]
          %v817 = vld [vmem:[%s3] sm:$0xff]
          %v818 = vld [vmem:[%s3 + $0x8] sm:$0xff]
          %v819 = vld [vmem:[%s3 + $0x10] sm:$0xff]
          %v820 = vld [vmem:[%s3 + $0x18] sm:$0xff]
          %822 = vset.pattern.permute.xlu0 0
          %823 = vperm.xlu0 %822, %v817
          %v824 = vpop.permute.xlu0 %823
          %827 = vset.pattern.permute.xlu0 0
          %828 = vperm.xlu0 %827, %v818
          %v829 = vpop.permute.xlu0 %828
          %832 = vset.pattern.permute.xlu0 0
          %833 = vperm.xlu0 %832, %v819
          %v834 = vpop.permute.xlu0 %833
          %837 = vset.pattern.permute.xlu0 0
          %838 = vperm.xlu0 %837, %v820
          %v839 = vpop.permute.xlu0 %838
          %v842 = vsel %vm346, %v813, 0
          %v845 = vsel %vm346, %v814, 0
          %v848 = vsel %vm346, %v815, 0
          %v851 = vsel %vm346, %v816, 0
          %853 = vmatprep.subr.mxu0 0.0
          %854 = vmatpush1.msra.mxu0 0.0
          %855 = vmatprep.subr.mxu0 0.0
          %856 = vmatpush1.msra.mxu0 0.0
          %857 = vmatprep.subr.mxu0 0.0
          %858 = vmatpush1.msra.mxu0 0.0
          %859 = vmatprep.subr.mxu0 0.0
          %860 = vmatpush1.msra.mxu0 0.0
          %861 = vmatprep.subr.mxu0 0.0
          %862 = vmatpush1.msra.mxu0 0.0
          %863 = vmatprep.subr.mxu0 0.0
          %864 = vmatpush1.msra.mxu0 0.0
          %865 = vmatprep.subr.mxu0 0.0
          %866 = vmatpush1.msra.mxu0 0.0
          %867 = vmatprep.subr.mxu0 0.0
          %868 = vmatpush1.msra.mxu0 0.0
          %869 = vmatprep.subr.mxu0 0.0
          %870 = vmatpush1.msra.mxu0 0.0
          %871 = vmatprep.subr.mxu0 0.0
          %872 = vmatpush1.msra.mxu0 0.0
          %873 = vmatprep.subr.mxu0 0.0
          %874 = vmatpush1.msra.mxu0 0.0
          %875 = vmatprep.subr.mxu0 0.0
          %876 = vmatpush1.msra.mxu0 0.0
          %877 = vmatprep.subr.mxu0 0.0
          %878 = vmatpush1.msra.mxu0 %v341
          %879 = vmatprep.subr.mxu0 0.0
          %880 = vmatpush1.msra.mxu0 %v340
          %881 = vmatprep.subr.mxu0 0.0
          %882 = vmatpush1.msra.mxu0 %v339
          %883 = vmatprep.subr.mxu0 0.0
          %884 = vmatpush1.msra.mxu0 %v338
          %885 = vmatprep.subr.mxu0 0.0
          %886 = vmatpush2.msra.mxu0 0.0
          %887 = vmatprep.subr.mxu0 0.0
          %888 = vmatpush2.msra.mxu0 0.0
          %889 = vmatprep.subr.mxu0 0.0
          %890 = vmatpush2.msra.mxu0 0.0
          %891 = vmatprep.subr.mxu0 0.0
          %892 = vmatpush2.msra.mxu0 0.0
          %893 = vmatprep.subr.mxu0 0.0
          %894 = vmatpush2.msra.mxu0 0.0
          %895 = vmatprep.subr.mxu0 0.0
          %896 = vmatpush2.msra.mxu0 0.0
          %897 = vmatprep.subr.mxu0 0.0
          %898 = vmatpush2.msra.mxu0 0.0
          %899 = vmatprep.subr.mxu0 0.0
          %900 = vmatpush2.msra.mxu0 0.0
          %901 = vmatprep.subr.mxu0 0.0
          %902 = vmatpush2.msra.mxu0 0.0
          %903 = vmatprep.subr.mxu0 0.0
          %904 = vmatpush2.msra.mxu0 0.0
          %905 = vmatprep.subr.mxu0 0.0
          %906 = vmatpush2.msra.mxu0 0.0
          %907 = vmatprep.subr.mxu0 0.0
          %908 = vmatpush2.msra.mxu0 0.0
          %909 = vmatprep.subr.mxu0 0.0
          %910 = vmatpush2.msra.mxu0 0.0
          %911 = vmatprep.subr.mxu0 0.0
          %912 = vmatpush2.msra.mxu0 0.0
          %913 = vmatprep.subr.mxu0 0.0
          %914 = vmatpush2.msra.mxu0 0.0
          %915 = vmatprep.subr.mxu0 0.0
          %916 = vmatpush2.msra.mxu0 0.0
          %917 = vmatprep.mubr.f32.mxu0 0.0
          %918 = vmatmul.mubr.f32.gmra.mxu0 %v842
          %v919 = vpop.f32.mrf.mxu0
          %v920 = vadd.f32 %v824, %v919
          %v921 = vpop.f32.mrf.mxu0
          %922 = vmatprep.mubr.f32.mxu0 0.0
          %923 = vmatmul.mubr.f32.gmra.mxu0 %v845
          %v924 = vpop.f32.mrf.mxu0
          %v925 = vadd.f32 %v829, %v924
          %v926 = vpop.f32.mrf.mxu0
          %927 = vmatprep.mubr.f32.mxu0 0.0
          %928 = vmatmul.mubr.f32.gmra.mxu0 %v848
          %v929 = vpop.f32.mrf.mxu0
          %v930 = vadd.f32 %v834, %v929
          %v931 = vpop.f32.mrf.mxu0
          %932 = vmatprep.mubr.f32.mxu0 0.0
          %933 = vmatmul.mubr.f32.gmra.mxu0 %v851
          %v934 = vpop.f32.mrf.mxu0
          %v935 = vadd.f32 %v839, %v934
          %v936 = vpop.f32.mrf.mxu0
          %937 = vdwg.mxu0
          %938 = vmatprep.subr.mxu0 0.0
          %939 = vmatpush1.msra.mxu0 %v812
          %940 = vmatprep.subr.mxu0 0.0
          %941 = vmatpush1.msra.mxu0 %v810
          %942 = vmatprep.subr.mxu0 0.0
          %943 = vmatpush1.msra.mxu0 %v808
          %944 = vmatprep.subr.mxu0 0.0
          %945 = vmatpush1.msra.mxu0 %v806
          %946 = vmatprep.subr.mxu0 0.0
          %947 = vmatpush1.msra.mxu0 %v804
          %948 = vmatprep.subr.mxu0 0.0
          %949 = vmatpush1.msra.mxu0 %v802
          %950 = vmatprep.subr.mxu0 0.0
          %951 = vmatpush1.msra.mxu0 %v800
          %952 = vmatprep.subr.mxu0 0.0
          %953 = vmatpush1.msra.mxu0 %v798
          %954 = vmatprep.subr.mxu0 0.0
          %955 = vmatpush1.msra.mxu0 %v796
          %956 = vmatprep.subr.mxu0 0.0
          %957 = vmatpush1.msra.mxu0 %v794
          %958 = vmatprep.subr.mxu0 0.0
          %959 = vmatpush1.msra.mxu0 %v792
          %960 = vmatprep.subr.mxu0 0.0
          %961 = vmatpush1.msra.mxu0 %v790
          %962 = vmatprep.subr.mxu0 0.0
          %963 = vmatpush1.msra.mxu0 %v788
          %964 = vmatprep.subr.mxu0 0.0
          %965 = vmatpush1.msra.mxu0 %v786
          %966 = vmatprep.subr.mxu0 0.0
          %967 = vmatpush1.msra.mxu0 %v784
          %968 = vmatprep.subr.mxu0 0.0
          %969 = vmatpush1.msra.mxu0 %v782
          %970 = vmatprep.subr.mxu0 0.0
          %971 = vmatpush2.msra.mxu0 0.0
          %972 = vmatprep.subr.mxu0 0.0
          %973 = vmatpush2.msra.mxu0 0.0
          %974 = vmatprep.subr.mxu0 0.0
          %975 = vmatpush2.msra.mxu0 0.0
          %976 = vmatprep.subr.mxu0 0.0
          %977 = vmatpush2.msra.mxu0 0.0
          %978 = vmatprep.subr.mxu0 0.0
          %979 = vmatpush2.msra.mxu0 0.0
          %980 = vmatprep.subr.mxu0 0.0
          %981 = vmatpush2.msra.mxu0 0.0
          %982 = vmatprep.subr.mxu0 0.0
          %983 = vmatpush2.msra.mxu0 0.0
          %984 = vmatprep.subr.mxu0 0.0
          %985 = vmatpush2.msra.mxu0 0.0
          %986 = vmatprep.subr.mxu0 0.0
          %987 = vmatpush2.msra.mxu0 0.0
          %988 = vmatprep.subr.mxu0 0.0
          %989 = vmatpush2.msra.mxu0 0.0
          %990 = vmatprep.subr.mxu0 0.0
          %991 = vmatpush2.msra.mxu0 0.0
          %992 = vmatprep.subr.mxu0 0.0
          %993 = vmatpush2.msra.mxu0 0.0
          %994 = vmatprep.subr.mxu0 0.0
          %995 = vmatpush2.msra.mxu0 0.0
          %996 = vmatprep.subr.mxu0 0.0
          %997 = vmatpush2.msra.mxu0 0.0
          %998 = vmatprep.subr.mxu0 0.0
          %999 = vmatpush2.msra.mxu0 0.0
          %1000 = vmatprep.subr.mxu0 0.0
          %1001 = vmatpush2.msra.mxu0 0.0
          %1002 = vmatprep.mubr.f32.mxu0 0.0
          %1003 = vmatmul.mubr.f32.gmra.mxu0 %v920
          %v1004 = vpop.f32.mrf.mxu0
          %v1005 = vadd.f32 0.0, %v1004
          %v1006 = vpop.f32.mrf.mxu0
          %1007 = vmatprep.mubr.f32.mxu0 0.0
          %1008 = vmatmul.mubr.f32.gmra.mxu0 %v925
          %v1009 = vpop.f32.mrf.mxu0
          %v1010 = vadd.f32 0.0, %v1009
          %v1011 = vpop.f32.mrf.mxu0
          %1012 = vmatprep.mubr.f32.mxu0 0.0
          %1013 = vmatmul.mubr.f32.gmra.mxu0 %v930
          %v1014 = vpop.f32.mrf.mxu0
          %v1015 = vadd.f32 0.0, %v1014
          %v1016 = vpop.f32.mrf.mxu0
          %1017 = vmatprep.mubr.f32.mxu0 0.0
          %1018 = vmatmul.mubr.f32.gmra.mxu0 %v935
          %v1019 = vpop.f32.mrf.mxu0
          %v1020 = vadd.f32 0.0, %v1019
          %v1021 = vpop.f32.mrf.mxu0
          %1022 = vdwg.mxu0
          %v1023 = vld [vmem:[#allocation5] sm:$0xff]
          %v1024 = vld [vmem:[#allocation5 + $0x8] sm:$0xff]
          %v1025 = vld [vmem:[#allocation5 + $0x10] sm:$0xff]
          %v1026 = vld [vmem:[#allocation5 + $0x18] sm:$0xff]
          %v1027 = vld [vmem:[%s5] sm:$0xff]
          %v1028 = vld [vmem:[%s5 + $0x8] sm:$0xff]
          %v1029 = vld [vmem:[%s5 + $0x10] sm:$0xff]
          %v1030 = vld [vmem:[%s5 + $0x18] sm:$0xff]
          %1032 = vset.pattern.permute.xlu0 0
          %1033 = vperm.xlu0 %1032, %v1027
          %v1034 = vpop.permute.xlu0 %1033
          %1037 = vset.pattern.permute.xlu0 0
          %1038 = vperm.xlu0 %1037, %v1028
          %v1039 = vpop.permute.xlu0 %1038
          %1042 = vset.pattern.permute.xlu0 0
          %1043 = vperm.xlu0 %1042, %v1029
          %v1044 = vpop.permute.xlu0 %1043
          %1047 = vset.pattern.permute.xlu0 0
          %1048 = vperm.xlu0 %1047, %v1030
          %v1049 = vpop.permute.xlu0 %1048
          %v1052 = vsel %vm346, %v1023, 0
          %v1055 = vsel %vm346, %v1024, 0
          %v1058 = vsel %vm346, %v1025, 0
          %v1061 = vsel %vm346, %v1026, 0
          %1063 = vmatprep.subr.mxu0 0.0
          %1064 = vmatpush1.msra.mxu0 0.0
          %1065 = vmatprep.subr.mxu0 0.0
          %1066 = vmatpush1.msra.mxu0 0.0
          %1067 = vmatprep.subr.mxu0 0.0
          %1068 = vmatpush1.msra.mxu0 0.0
          %1069 = vmatprep.subr.mxu0 0.0
          %1070 = vmatpush1.msra.mxu0 0.0
          %1071 = vmatprep.subr.mxu0 0.0
          %1072 = vmatpush1.msra.mxu0 0.0
          %1073 = vmatprep.subr.mxu0 0.0
          %1074 = vmatpush1.msra.mxu0 0.0
          %1075 = vmatprep.subr.mxu0 0.0
          %1076 = vmatpush1.msra.mxu0 0.0
          %1077 = vmatprep.subr.mxu0 0.0
          %1078 = vmatpush1.msra.mxu0 0.0
          %1079 = vmatprep.subr.mxu0 0.0
          %1080 = vmatpush1.msra.mxu0 0.0
          %1081 = vmatprep.subr.mxu0 0.0
          %1082 = vmatpush1.msra.mxu0 0.0
          %1083 = vmatprep.subr.mxu0 0.0
          %1084 = vmatpush1.msra.mxu0 0.0
          %1085 = vmatprep.subr.mxu0 0.0
          %1086 = vmatpush1.msra.mxu0 0.0
          %1087 = vmatprep.subr.mxu0 0.0
          %1088 = vmatpush1.msra.mxu0 %v1020
          %1089 = vmatprep.subr.mxu0 0.0
          %1090 = vmatpush1.msra.mxu0 %v1015
          %1091 = vmatprep.subr.mxu0 0.0
          %1092 = vmatpush1.msra.mxu0 %v1010
          %1093 = vmatprep.subr.mxu0 0.0
          %1094 = vmatpush1.msra.mxu0 %v1005
          %1095 = vmatprep.subr.mxu0 0.0
          %1096 = vmatpush2.msra.mxu0 0.0
          %1097 = vmatprep.subr.mxu0 0.0
          %1098 = vmatpush2.msra.mxu0 0.0
          %1099 = vmatprep.subr.mxu0 0.0
          %1100 = vmatpush2.msra.mxu0 0.0
          %1101 = vmatprep.subr.mxu0 0.0
          %1102 = vmatpush2.msra.mxu0 0.0
          %1103 = vmatprep.subr.mxu0 0.0
          %1104 = vmatpush2.msra.mxu0 0.0
          %1105 = vmatprep.subr.mxu0 0.0
          %1106 = vmatpush2.msra.mxu0 0.0
          %1107 = vmatprep.subr.mxu0 0.0
          %1108 = vmatpush2.msra.mxu0 0.0
          %1109 = vmatprep.subr.mxu0 0.0
          %1110 = vmatpush2.msra.mxu0 0.0
          %1111 = vmatprep.subr.mxu0 0.0
          %1112 = vmatpush2.msra.mxu0 0.0
          %1113 = vmatprep.subr.mxu0 0.0
          %1114 = vmatpush2.msra.mxu0 0.0
          %1115 = vmatprep.subr.mxu0 0.0
          %1116 = vmatpush2.msra.mxu0 0.0
          %1117 = vmatprep.subr.mxu0 0.0
          %1118 = vmatpush2.msra.mxu0 0.0
          %1119 = vmatprep.subr.mxu0 0.0
          %1120 = vmatpush2.msra.mxu0 0.0
          %1121 = vmatprep.subr.mxu0 0.0
          %1122 = vmatpush2.msra.mxu0 0.0
          %1123 = vmatprep.subr.mxu0 0.0
          %1124 = vmatpush2.msra.mxu0 0.0
          %1125 = vmatprep.subr.mxu0 0.0
          %1126 = vmatpush2.msra.mxu0 0.0
          %1127 = vmatprep.mubr.f32.mxu0 0.0
          %1128 = vmatmul.mubr.f32.gmra.mxu0 %v1052
          %v1129 = vpop.f32.mrf.mxu0
          %v1130 = vadd.f32 %v1034, %v1129
          %v1131 = vpop.f32.mrf.mxu0
          %1132 = vmatprep.mubr.f32.mxu0 0.0
          %1133 = vmatmul.mubr.f32.gmra.mxu0 %v1055
          %v1134 = vpop.f32.mrf.mxu0
          %v1135 = vadd.f32 %v1039, %v1134
          %v1136 = vpop.f32.mrf.mxu0
          %1137 = vmatprep.mubr.f32.mxu0 0.0
          %1138 = vmatmul.mubr.f32.gmra.mxu0 %v1058
          %v1139 = vpop.f32.mrf.mxu0
          %v1140 = vadd.f32 %v1044, %v1139
          %v1141 = vpop.f32.mrf.mxu0
          %1142 = vmatprep.mubr.f32.mxu0 0.0
          %1143 = vmatmul.mubr.f32.gmra.mxu0 %v1061
          %v1144 = vpop.f32.mrf.mxu0
          %v1145 = vadd.f32 %v1049, %v1144
          %v1146 = vpop.f32.mrf.mxu0
          %1147 = vdwg.mxu0
          %s1148 = smul.u32 %s28, 32
          %s1149 = scalar_lea.vmem [#allocation2], %s1148
          %1150 = vst [vmem:[%s1149] sm:$0xff] %v1130
          %1151 = vst [vmem:[%s1149 + $0x8] sm:$0xff] %v1135
          %1152 = vst [vmem:[%s1149 + $0x10] sm:$0xff] %v1140
          %1153 = vst [vmem:[%s1149 + $0x18] sm:$0xff] %v1145
        $region60: #{tpu_custom_call.1} parent=51 // pred_fallthru
          _
        %p1154 = scmp.eq.s32.totalorder %s27, 1
        // Predicated region
        $region61: #{tpu_custom_call.1} parent=51 // pred_check
          %p1155 = pneg %p1154
        $region62: #{tpu_custom_call.1} parent=51 // pred_check_branch
          %1157 = sbr.rel (%p1155) target = $region64
        $region63: #{tpu_custom_call.1} parent=51 // pred_region
          %p1158 = scmp.eq.s32.totalorder %s28, 0
          // Predicated region
          $region65: #{tpu_custom_call.1} parent=63 // pred_check
            %p1159 = pneg %p1158
          $region66: #{tpu_custom_call.1} parent=63 // pred_check_branch
            %1161 = sbr.rel (%p1159) target = $region68
          $region67: #{tpu_custom_call.1} parent=63 // pred_region
            %v1162 = vld [vmem:[#allocation2] sm:$0xff]
            %v1163 = vld [vmem:[#allocation2 + $0x8] sm:$0xff]
            %v1164 = vld [vmem:[#allocation2 + $0x10] sm:$0xff]
            %v1165 = vld [vmem:[#allocation2 + $0x18] sm:$0xff]
            %1166 = vadd.xlane.f32.xlu0 %v1162
            %v1167 = vpop.xlane.xlu0 %1166
            %1168 = vadd.xlane.f32.xlu0 %v1163
            %v1169 = vpop.xlane.xlu0 %1168
            %1170 = vadd.xlane.f32.xlu0 %v1164
            %v1171 = vpop.xlane.xlu0 %1170
            %1172 = vadd.xlane.f32.xlu0 %v1165
            %v1173 = vpop.xlane.xlu0 %1172
            %v1174 = vadd.f32 %v1167, 0.0
            %v1175 = vadd.f32 %v1169, 0.0
            %v1176 = vadd.f32 %v1171, 0.0
            %v1177 = vadd.f32 %v1173, 0.0
            %s1178 = scalar_lea.vmem [#allocation2], 32
            %v1179 = vld [vmem:[%s1178] sm:$0xff]
            %v1180 = vld [vmem:[%s1178 + $0x8] sm:$0xff]
            %v1181 = vld [vmem:[%s1178 + $0x10] sm:$0xff]
            %v1182 = vld [vmem:[%s1178 + $0x18] sm:$0xff]
            %1183 = vadd.xlane.f32.xlu0 %v1179
            %v1184 = vpop.xlane.xlu0 %1183
            %1185 = vadd.xlane.f32.xlu0 %v1180
            %v1186 = vpop.xlane.xlu0 %1185
            %1187 = vadd.xlane.f32.xlu0 %v1181
            %v1188 = vpop.xlane.xlu0 %1187
            %1189 = vadd.xlane.f32.xlu0 %v1182
            %v1190 = vpop.xlane.xlu0 %1189
            %v1191 = vadd.f32 %v1174, %v1184
            %v1192 = vadd.f32 %v1175, %v1186
            %v1193 = vadd.f32 %v1176, %v1188
            %v1194 = vadd.f32 %v1177, %v1190
            %v1195 = vmul.f32 %v1191, 0.00390625
            %v1196 = vmul.f32 %v1192, 0.00390625
            %v1197 = vmul.f32 %v1193, 0.00390625
            %v1198 = vmul.f32 %v1194, 0.00390625
            %v1199 = vsub.f32 %v1162, %v1195
            %v1200 = vsub.f32 %v1163, %v1196
            %v1201 = vsub.f32 %v1164, %v1197
            %v1202 = vsub.f32 %v1165, %v1198
            %v1203 = vmul.f32 %v1199, %v1199
            %v1204 = vmul.f32 %v1200, %v1200
            %v1205 = vmul.f32 %v1201, %v1201
            %v1206 = vmul.f32 %v1202, %v1202
            %1207 = vadd.xlane.f32.xlu0 %v1203
            %v1208 = vpop.xlane.xlu0 %1207
            %1209 = vadd.xlane.f32.xlu0 %v1204
            %v1210 = vpop.xlane.xlu0 %1209
            %1211 = vadd.xlane.f32.xlu0 %v1205
            %v1212 = vpop.xlane.xlu0 %1211
            %1213 = vadd.xlane.f32.xlu0 %v1206
            %v1214 = vpop.xlane.xlu0 %1213
            %v1215 = vadd.f32 %v1208, 0.0
            %v1216 = vadd.f32 %v1210, 0.0
            %v1217 = vadd.f32 %v1212, 0.0
            %v1218 = vadd.f32 %v1214, 0.0
            %v1219 = vsub.f32 %v1179, %v1195
            %v1220 = vsub.f32 %v1180, %v1196
            %v1221 = vsub.f32 %v1181, %v1197
            %v1222 = vsub.f32 %v1182, %v1198
            %v1223 = vmul.f32 %v1219, %v1219
            %v1224 = vmul.f32 %v1220, %v1220
            %v1225 = vmul.f32 %v1221, %v1221
            %v1226 = vmul.f32 %v1222, %v1222
            %1227 = vadd.xlane.f32.xlu0 %v1223
            %v1228 = vpop.xlane.xlu0 %1227
            %1229 = vadd.xlane.f32.xlu0 %v1224
            %v1230 = vpop.xlane.xlu0 %1229
            %1231 = vadd.xlane.f32.xlu0 %v1225
            %v1232 = vpop.xlane.xlu0 %1231
            %1233 = vadd.xlane.f32.xlu0 %v1226
            %v1234 = vpop.xlane.xlu0 %1233
            %v1235 = vadd.f32 %v1215, %v1228
            %v1236 = vadd.f32 %v1216, %v1230
            %v1237 = vadd.f32 %v1217, %v1232
            %v1238 = vadd.f32 %v1218, %v1234
            %v1239 = vmul.f32 %v1235, 0.00390625
            %v1240 = vmul.f32 %v1236, 0.00390625
            %v1241 = vmul.f32 %v1237, 0.00390625
            %v1242 = vmul.f32 %v1238, 0.00390625
            %v1243 = vadd.f32 %v1239, 1e-05
            %v1244 = vadd.f32 %v1240, 1e-05
            %v1245 = vadd.f32 %v1241, 1e-05
            %v1246 = vadd.f32 %v1242, 1e-05
            %v1247 = vrsqrt.pop %v1243
            %v1248 = vrsqrt.pop %v1244
            %v1249 = vrsqrt.pop %v1245
            %v1250 = vrsqrt.pop %v1246
            %v1251 = vld [vmem:[%s6] sm:$0xff]
            %v1252 = vld [vmem:[%s6 + $0x8] sm:$0xff]
            %v1253 = vld [vmem:[%s6 + $0x10] sm:$0xff]
            %v1254 = vld [vmem:[%s6 + $0x18] sm:$0xff]
            %v1255 = vmul.f32 %v1251, %v1247
            %v1256 = vmul.f32 %v1252, %v1248
            %v1257 = vmul.f32 %v1253, %v1249
            %v1258 = vmul.f32 %v1254, %v1250
            %vm1259 = vcmask 7168
            %1260 = vst.msk [vmem:[#allocation3] sm:$0xff] %vm1259, %v1255
            %1261 = vst.msk [vmem:[#allocation3 + $0x8] sm:$0xff] %vm1259, %v1256
            %1262 = vst.msk [vmem:[#allocation3 + $0x10] sm:$0xff] %vm1259, %v1257
            %1263 = vst.msk [vmem:[#allocation3 + $0x18] sm:$0xff] %vm1259, %v1258
            %v1264 = vld [vmem:[%s7] sm:$0xff]
            %v1265 = vld [vmem:[%s7 + $0x8] sm:$0xff]
            %v1266 = vld [vmem:[%s7 + $0x10] sm:$0xff]
            %v1267 = vld [vmem:[%s7 + $0x18] sm:$0xff]
            %v1268 = vld [vmem:[%s6] sm:$0xff]
            %v1269 = vld [vmem:[%s6 + $0x8] sm:$0xff]
            %v1270 = vld [vmem:[%s6 + $0x10] sm:$0xff]
            %v1271 = vld [vmem:[%s6 + $0x18] sm:$0xff]
            %v1272 = vmul.f32 %v1195, %v1268
            %v1273 = vmul.f32 %v1196, %v1269
            %v1274 = vmul.f32 %v1197, %v1270
            %v1275 = vmul.f32 %v1198, %v1271
            %v1276 = vmul.f32 %v1272, %v1247
            %v1277 = vmul.f32 %v1273, %v1248
            %v1278 = vmul.f32 %v1274, %v1249
            %v1279 = vmul.f32 %v1275, %v1250
            %v1280 = vsub.f32 %v1264, %v1276
            %v1281 = vsub.f32 %v1265, %v1277
            %v1282 = vsub.f32 %v1266, %v1278
            %v1283 = vsub.f32 %v1267, %v1279
            %1284 = vst.msk [vmem:[#allocation4] sm:$0xff] %vm1259, %v1280
            %1285 = vst.msk [vmem:[#allocation4 + $0x8] sm:$0xff] %vm1259, %v1281
            %1286 = vst.msk [vmem:[#allocation4 + $0x10] sm:$0xff] %vm1259, %v1282
            %1287 = vst.msk [vmem:[#allocation4 + $0x18] sm:$0xff] %vm1259, %v1283
          $region68: #{tpu_custom_call.1} parent=63 // pred_fallthru
            _
          %s1288 = smul.u32 %s28, 32
          %s1289 = scalar_lea.vmem [#allocation2], %s1288
          %v1290 = vld [vmem:[%s1289] sm:$0xff]
          %v1291 = vld [vmem:[%s1289 + $0x8] sm:$0xff]
          %v1292 = vld [vmem:[%s1289 + $0x10] sm:$0xff]
          %v1293 = vld [vmem:[%s1289 + $0x18] sm:$0xff]
          %v1294 = vld [vmem:[%s332] sm:$0xff]
          %v1295 = vld [vmem:[%s332 + $0x8] sm:$0xff]
          %v1296 = vld [vmem:[%s332 + $0x10] sm:$0xff]
          %v1297 = vld [vmem:[%s332 + $0x18] sm:$0xff]
          %v1298 = vld [vmem:[#allocation3] sm:$0xff]
          %v1299 = vld [vmem:[#allocation3 + $0x8] sm:$0xff]
          %v1300 = vld [vmem:[#allocation3 + $0x10] sm:$0xff]
          %v1301 = vld [vmem:[#allocation3 + $0x18] sm:$0xff]
          %1303 = vset.pattern.permute.xlu0 0
          %1304 = vperm.xlu0 %1303, %v1298
          %v1305 = vpop.permute.xlu0 %1304
          %1308 = vset.pattern.permute.xlu0 0
          %1309 = vperm.xlu0 %1308, %v1299
          %v1310 = vpop.permute.xlu0 %1309
          %1313 = vset.pattern.permute.xlu0 0
          %1314 = vperm.xlu0 %1313, %v1300
          %v1315 = vpop.permute.xlu0 %1314
          %1318 = vset.pattern.permute.xlu0 0
          %1319 = vperm.xlu0 %1318, %v1301
          %v1320 = vpop.permute.xlu0 %1319
          %v1322 = vmul.f32 %v1290, %v1305
          %v1323 = vmul.f32 %v1291, %v1310
          %v1324 = vmul.f32 %v1292, %v1315
          %v1325 = vmul.f32 %v1293, %v1320
          %v1326 = vld [vmem:[#allocation4] sm:$0xff]
          %v1327 = vld [vmem:[#allocation4 + $0x8] sm:$0xff]
          %v1328 = vld [vmem:[#allocation4 + $0x10] sm:$0xff]
          %v1329 = vld [vmem:[#allocation4 + $0x18] sm:$0xff]
          %1331 = vset.pattern.permute.xlu0 0
          %1332 = vperm.xlu0 %1331, %v1326
          %v1333 = vpop.permute.xlu0 %1332
          %1336 = vset.pattern.permute.xlu0 0
          %1337 = vperm.xlu0 %1336, %v1327
          %v1338 = vpop.permute.xlu0 %1337
          %1341 = vset.pattern.permute.xlu0 0
          %1342 = vperm.xlu0 %1341, %v1328
          %v1343 = vpop.permute.xlu0 %1342
          %1346 = vset.pattern.permute.xlu0 0
          %1347 = vperm.xlu0 %1346, %v1329
          %v1348 = vpop.permute.xlu0 %1347
          %v1350 = vadd.f32 %v1322, %v1333
          %v1351 = vadd.f32 %v1323, %v1338
          %v1352 = vadd.f32 %v1324, %v1343
          %v1353 = vadd.f32 %v1325, %v1348
          %v1354 = vmax.f32 %v1350, 0.0
          %v1355 = vmax.f32 %v1351, 0.0
          %v1356 = vmax.f32 %v1352, 0.0
          %v1357 = vmax.f32 %v1353, 0.0
          %v1358 = vadd.f32 %v1294, %v1354
          %v1359 = vadd.f32 %v1295, %v1355
          %v1360 = vadd.f32 %v1296, %v1356
          %v1361 = vadd.f32 %v1297, %v1357
          %1362 = vst [vmem:[%s327] sm:$0xff] %v1358
          %1363 = vst [vmem:[%s327 + $0x8] sm:$0xff] %v1359
          %1364 = vst [vmem:[%s327 + $0x10] sm:$0xff] %v1360
          %1365 = vst [vmem:[%s327 + $0x18] sm:$0xff] %v1361
        $region64: #{tpu_custom_call.1} parent=51 // pred_fallthru
          _
        %s1366 = sand.u32 %s218, 1
        %s1367 = scalar_lea.sflag [#allocation7], %s1366
        %s1368 = sand.u32 %s218, 1
        %s1369 = smul.addr %s1368, 32
        %s1370 = scalar_lea.vmem [#allocation8], %s1369
        // Predicated region
        $region69: #{tpu_custom_call.1} parent=51 // pred_check
          %p1371 = pneg %p228
        $region70: #{tpu_custom_call.1} parent=51 // pred_check_branch
          %1373 = sbr.rel (%p1371) target = $region72
        $region71: #{tpu_custom_call.1} parent=51 // pred_region
          %s1374 = smul.u32 %s28, %s27
          %s1376 = ssub.s32 512, 512
          %1377 = vsyncadd %s1367, %s1376
          %s1378 = smul.addr %s1374, 4
          %s1379 = smul.addr %s1378, 128
          %s1380 = scalar_lea.hbm %s8, %s1379
          %s1381 = sshll.u32 %s1370, 4
          %s1382 = int_to_ptr.vmem [resolvable:$true] %s1381
          %1387 = dma.vmem_to_hbm [thread:$0]  %s1382, 512, %s1380, %s1367, 128, 128, 8
        $region72: #{tpu_custom_call.1} parent=51 // pred_fallthru
          _
      $region52: #{tpu_custom_call.1} parent=5 // pred_fallthru
        _
      %p1388 = scmp.le.s32.totalorder 2, %s18
      // Predicated region
      $region73: #{tpu_custom_call.1} parent=5 // pred_check
        %p1389 = pneg %p1388
      $region74: #{tpu_custom_call.1} parent=5 // pred_check_branch
        %1391 = sbr.rel (%p1389) target = $region76
      $region75: #{tpu_custom_call.1} parent=5 // pred_region
        %s1392 = ssub.s32 %s18, 2
        // Predicated region
        $region77: #{tpu_custom_call.1} parent=75 // pred_check
          %p1393 = pneg %p234
        $region78: #{tpu_custom_call.1} parent=75 // pred_check_branch
          %1395 = sbr.rel (%p1393) target = $region80
        $region79: #{tpu_custom_call.1} parent=75 // pred_region
          %s1396 = sand.u32 %s219, 1
          %s1397 = scalar_lea.sflag [#allocation7], %s1396
          %s1398 = sand.u32 %s219, 1
          %s1399 = smul.addr %s1398, 32
          %s1400 = scalar_lea.vmem [#allocation8], %s1399
          %1401 = dma.done %s1397, 512
        $region80: #{tpu_custom_call.1} parent=75 // pred_fallthru
          _
      $region76: #{tpu_custom_call.1} parent=5 // pred_fallthru
        _
    $region6: #{tpu_custom_call.1} parent=1 // loop_footer
      %s22 = sadd.s32 1, %s18
    $region7: #{tpu_custom_call.1} parent=1 // loop_footer_branch
      %17 = sbr.rel target = $region3
    $region8: #{tpu_custom_call.1} parent=1 // loop_exit
      _
    %1402 = vsyncpa [#allocation6], 1
    %s1403 = scalar_lea.sflag [#allocation6], 1
    %1404 = vsyncpa %s1403, 1
    %1405 = vsyncpa [#allocation7], 1
    %s1406 = scalar_lea.sflag [#allocation7], 1
    %1407 = vsyncpa %s1406, 1

</llo_original>
